<compile_context>
chip_gen: v5e
topology: v5e:2x2
jax: 0.10.0
libtpu: 0.0.40
codegen_flags: <defaults>
</compile_context>

<pallas_src>
import functools
import math

import jax
import jax.numpy as jnp
import numpy as np
from jax.experimental import pallas as pl
from jax.experimental.pallas import tpu as pltpu

EPS = 1e-12        # ESM1LayerNorm eps (inside the sqrt)
ATTN_PAD = 128     # lane-dense padding of the attention-weights output


def _layernorm(h, w, b):
    # ESM1LayerNorm: mean/var over last dim, eps inside the sqrt, affine.
    mean = jnp.mean(h, axis=-1, keepdims=True)
    hz = h - mean
    var = jnp.mean(hz * hz, axis=-1, keepdims=True)
    return w * (hz * jax.lax.rsqrt(var + EPS)) + b


def _erf(z):
    # Abramowitz & Stegun 7.1.26, |abs err| < 1.5e-7 (f32-roundoff level).
    # TODO(synk): use jax.lax.erf directly if/when Mosaic lowers erf_p.
    a1, a2, a3, a4, a5 = (0.254829592, -0.284496736, 1.421413741,
                          -1.453152027, 1.061405429)
    pc = 0.3275911
    az = jnp.abs(z)
    t = 1.0 / (1.0 + pc * az)
    poly = ((((a5 * t + a4) * t + a3) * t + a2) * t + a1) * t
    y = 1.0 - poly * jnp.exp(-az * az)
    return jnp.where(z < 0.0, -y, y)


def transformer_layer_kernel(
    x_ref,
    ln1_w, ln1_b,
    wqkv_t, bqkv,
    bias_k_g, bias_v_g,
    wo_t, bo,
    ln2_w, ln2_b,
    w1_t, b1, w2_t, b2,
    y_ref, attn_ref,
    *, batch, seq, num_heads, head_dim,
):
    B, T, H, d = batch, seq, num_heads, head_dim
    x = x_ref[...]                                            # (B*T, E)

    # ---- self_attn_layer_norm ----
    h1 = _layernorm(x, ln1_w[...], ln1_b[...])

    # ---- fused Q/K/V projection: one (B*T, E) @ (E, 3E) MXU matmul ----
    # Column layout head-major: [h0: q|k|v][h1: q|k|v]...; query columns and
    # bias are pre-scaled by 1/sqrt(d) in the wrapper.
    qkv = jnp.dot(h1, wqkv_t[...], preferred_element_type=jnp.float32) + bqkv[...]

    # ---- (b, h)-batched views, g = b*H + h: sublane-aligned row slices +
    #      head-major lane slices, then one stack (no reshape of lanes). ----
    qkv_g = jnp.stack(
        [qkv[b * T:(b + 1) * T, hh * 3 * d:(hh + 1) * 3 * d]
         for b in range(B) for hh in range(H)],
        axis=0)                                               # (G, T, 3d)
    q = qkv_g[:, :, 0:d]                                      # (G, T, d)
    k = qkv_g[:, :, d:2 * d]                                  # (G, T, d)
    v = qkv_g[:, :, 2 * d:3 * d]                              # (G, T, d)

    # ---- attention with analytic bias_kv column (no T+1 concatenations) ----
    s = jnp.einsum("gtd,gsd->gts", q, k,
                   preferred_element_type=jnp.float32)        # (G, T, T)
    s_b = jnp.sum(q * bias_k_g[...], axis=-1, keepdims=True)  # (G, T, 1)
    m = jnp.maximum(jnp.max(s, axis=-1, keepdims=True), s_b)
    e = jnp.exp(s - m)
    e_b = jnp.exp(s_b - m)
    inv = 1.0 / (jnp.sum(e, axis=-1, keepdims=True) + e_b)    # exact f32
    p = e * inv                                               # (G, T, T)
    p_b = e_b * inv                                           # (G, T, 1)

    o = jnp.einsum("gts,gsd->gtd", p, v,
                   preferred_element_type=jnp.float32)
    o = o + p_b * bias_v_g[...]                               # (G, T, d)

    # ---- out_proj: head reduction inside the MXU f32 accumulator ----
    o_flat = jnp.concatenate(
        [jnp.concatenate([o[b * H + hh] for hh in range(H)], axis=-1)
         for b in range(B)],
        axis=0)                                               # (B*T, E)
    attn_proj = jnp.dot(o_flat, wo_t[...],
                        preferred_element_type=jnp.float32) + bo[...]
    x1 = x + attn_proj

    # ---- head-averaged attention weights, single lane-dense store ----
    p_avg = jnp.mean(p.reshape(B, H, T, T), axis=1)           # (B, T, T)
    pb_avg = jnp.mean(p_b.reshape(B, H, T, 1), axis=1)        # (B, T, 1)
    pad = jnp.zeros((B, T, ATTN_PAD - T - 1), jnp.float32)
    attn_ref[...] = jnp.concatenate([p_avg, pb_avg, pad], axis=-1)

    # ---- final_layer_norm + FFN (exact-erf GELU) + residual ----
    h2 = _layernorm(x1, ln2_w[...], ln2_b[...])
    f = jnp.dot(h2, w1_t[...], preferred_element_type=jnp.float32) + b1[...]
    f = f * 0.5 * (1.0 + _erf(f * (1.0 / math.sqrt(2.0))))
    y = jnp.dot(f, w2_t[...], preferred_element_type=jnp.float32) + b2[...]
    y_ref[...] = (x1 + y).astype(y_ref.dtype)


def transformer_layer(x_tbe, params, num_heads):
    T, B, E = x_tbe.shape
    H = num_heads
    d = E // H
    scaling = 1.0 / math.sqrt(d)

    # Activations flattened to (B*T, E); the whole layer is one kernel step.
    x_flat = jnp.transpose(x_tbe, (1, 0, 2)).reshape(B * T, E)

    # --- wrapper-side (trace-time) weight rearrangement: all per-head layout
    #     work happens here, never inside the kernel. ---
    def per_head_in(w):          # torch Linear weight (E_out, E_in) -> (H, E_in, d)
        return jnp.transpose(w.reshape(H, d, E), (0, 2, 1))

    wq_h = per_head_in(params["wq"]) * scaling               # 1/sqrt(d) folded in
    wk_h = per_head_in(params["wk"])
    wv_h = per_head_in(params["wv"])
    # fused (E, 3E) with head-major columns: [h0: q|k|v][h1: q|k|v]...
    wqkv_t = jnp.transpose(
        jnp.concatenate([wq_h, wk_h, wv_h], axis=-1), (1, 0, 2)
    ).reshape(E, 3 * E)
    bqkv = jnp.concatenate(
        [params["bq"].reshape(H, 1, d) * scaling,
         params["bk"].reshape(H, 1, d),
         params["bv"].reshape(H, 1, d)], axis=-1,
    ).reshape(1, 3 * E)

    # per-(b, h) bias rows, g = b*H + h
    bias_k_g = jnp.tile(params["bias_k"].reshape(H, 1, d), (B, 1, 1))
    bias_v_g = jnp.tile(params["bias_v"].reshape(H, 1, d), (B, 1, 1))

    def r2(a):
        return a.reshape(1, -1)

    weights = [
        r2(params["ln1_w"]), r2(params["ln1_b"]),
        wqkv_t, bqkv,
        bias_k_g, bias_v_g,
        params["wo"].T, r2(params["bo"]),
        r2(params["ln2_w"]), r2(params["ln2_b"]),
        params["w1"].T, r2(params["b1"]),
        params["w2"].T, r2(params["b2"]),
    ]

    kernel = functools.partial(
        transformer_layer_kernel, batch=B, seq=T, num_heads=H, head_dim=d
    )
    vmem = pl.BlockSpec(memory_space=pltpu.MemorySpace.VMEM)  # full array in VMEM
    y_flat, attn_pad = pl.pallas_call(
        kernel,
        in_specs=[vmem] * (1 + len(weights)),
        out_specs=(vmem, vmem),
        out_shape=(
            jax.ShapeDtypeStruct((B * T, E), jnp.float32),
            jax.ShapeDtypeStruct((B, T, ATTN_PAD), jnp.float32),
        ),
    )(x_flat, *weights)

    y_tbe = jnp.transpose(y_flat.reshape(B, T, E), (1, 0, 2))  # (T, B, E)
    attn = attn_pad[:, :, :T + 1]                              # (B, T, T+1)
    return y_tbe, attn


def reference(x_tbe, params, num_heads):
    """Pure-JAX mirror of the PyTorch forward pass for verification."""
    T, B, E = x_tbe.shape
    d = E // num_heads

    def ln(h, w, b):
        m = h.mean(-1, keepdims=True)
        hz = h - m
        v = (hz * hz).mean(-1, keepdims=True)
        return w * (hz / jnp.sqrt(v + EPS)) + b

    x = x_tbe
    residual = x
    h = ln(x, params["ln1_w"], params["ln1_b"])
    scaling = d ** -0.5
    q = (h @ params["wq"].T + params["bq"]) * scaling
    k = h @ params["wk"].T + params["bk"]
    v = h @ params["wv"].T + params["bv"]
    bias_k = jnp.broadcast_to(params["bias_k"].reshape(1, 1, E), (1, B, E))
    bias_v = jnp.broadcast_to(params["bias_v"].reshape(1, 1, E), (1, B, E))
    k = jnp.concatenate([k, bias_k], axis=0)  # (T+1, B, E)
    v = jnp.concatenate([v, bias_v], axis=0)
    S = T + 1
    qh = q.reshape(T, B, num_heads, d).transpose(1, 2, 0, 3)
    kh = k.reshape(S, B, num_heads, d).transpose(1, 2, 0, 3)
    vh = v.reshape(S, B, num_heads, d).transpose(1, 2, 0, 3)
    s = jnp.einsum("bhtd,bhsd->bhts", qh, kh)
    p = jax.nn.softmax(s, axis=-1)
    o = jnp.einsum("bhts,bhsd->bhtd", p, vh)
    o = o.transpose(2, 0, 1, 3).reshape(T, B, E)
    o = o @ params["wo"].T + params["bo"]
    x = residual + o
    attn = p.mean(axis=1)  # (B, T, S)

    residual = x
    h2 = ln(x, params["ln2_w"], params["ln2_b"])
    f = h2 @ params["w1"].T + params["b1"]
    f = f * 0.5 * (1.0 + jax.lax.erf(f / math.sqrt(2.0)))
    y = f @ params["w2"].T + params["b2"]
    return residual + y, attn


if __name__ == "__main__":
    T, B, E, H, F = 8, 2, 32, 4, 64

    key = jax.random.PRNGKey(0)
    keys = jax.random.split(key, 24)

    def nrm(k, shape, scale):
        return (scale * jax.random.normal(k, shape)).astype(jnp.float32)

    params = dict(
        ln1_w=jnp.ones((E,), jnp.float32) + nrm(keys[0], (E,), 0.05),
        ln1_b=nrm(keys[1], (E,), 0.05),
        wq=nrm(keys[2], (E, E), 0.1), bq=nrm(keys[3], (E,), 0.05),
        wk=nrm(keys[4], (E, E), 0.1), bk=nrm(keys[5], (E,), 0.05),
        wv=nrm(keys[6], (E, E), 0.1), bv=nrm(keys[7], (E,), 0.05),
        bias_k=nrm(keys[8], (E,), 0.1), bias_v=nrm(keys[9], (E,), 0.1),
        wo=nrm(keys[10], (E, E), 0.1), bo=nrm(keys[11], (E,), 0.05),
        ln2_w=jnp.ones((E,), jnp.float32) + nrm(keys[12], (E,), 0.05),
        ln2_b=nrm(keys[13], (E,), 0.05),
        w1=nrm(keys[14], (F, E), 0.1), b1=nrm(keys[15], (F,), 0.05),
        w2=nrm(keys[16], (E, F), 0.1), b2=nrm(keys[17], (E,), 0.05),
    )

    x = jax.random.normal(keys[18], (T, B, E), jnp.float32)

    y, attn = transformer_layer(x, params, H)
    jax.block_until_ready((y, attn))

    y_exp, attn_exp = reference(x, params, H)
    np.testing.assert_allclose(np.asarray(y), np.asarray(y_exp), atol=1e-4, rtol=1e-4)
    np.testing.assert_allclose(np.asarray(attn), np.asarray(attn_exp), atol=1e-5, rtol=1e-5)

    print("KERNEL_OK")
</pallas_src>

<mosaic_0001>
module attributes {stable_mosaic.version = 11 : i64} {
  func.func @transformer_layer_kernel(%arg0: memref<16x32xf32, #tpu.memory_space<vmem>>, %arg1: memref<1x32xf32, #tpu.memory_space<vmem>>, %arg2: memref<1x32xf32, #tpu.memory_space<vmem>>, %arg3: memref<32x96xf32, #tpu.memory_space<vmem>>, %arg4: memref<1x96xf32, #tpu.memory_space<vmem>>, %arg5: memref<8x1x8xf32, #tpu.memory_space<vmem>>, %arg6: memref<8x1x8xf32, #tpu.memory_space<vmem>>, %arg7: memref<32x32xf32, #tpu.memory_space<vmem>>, %arg8: memref<1x32xf32, #tpu.memory_space<vmem>>, %arg9: memref<1x32xf32, #tpu.memory_space<vmem>>, %arg10: memref<1x32xf32, #tpu.memory_space<vmem>>, %arg11: memref<32x64xf32, #tpu.memory_space<vmem>>, %arg12: memref<1x64xf32, #tpu.memory_space<vmem>>, %arg13: memref<64x32xf32, #tpu.memory_space<vmem>>, %arg14: memref<1x32xf32, #tpu.memory_space<vmem>>, %arg15: memref<16x32xf32, #tpu.memory_space<vmem>>, %arg16: memref<2x8x128xf32, #tpu.memory_space<vmem>>) attributes {dimension_semantics = [], scalar_prefetch = 0 : i64, scratch_operands = 0 : i64, tpu.core_type = #tpu.core_type<tc>} {
    %c0 = arith.constant 0 : index
    %c0_0 = arith.constant 0 : index
    %0 = vector.load %arg0[%c0, %c0_0] : memref<16x32xf32, #tpu.memory_space<vmem>>, vector<16x32xf32>
    %c0_1 = arith.constant 0 : index
    %c0_2 = arith.constant 0 : index
    %1 = vector.load %arg1[%c0_1, %c0_2] : memref<1x32xf32, #tpu.memory_space<vmem>>, vector<1x32xf32>
    %c0_3 = arith.constant 0 : index
    %c0_4 = arith.constant 0 : index
    %2 = vector.load %arg2[%c0_3, %c0_4] : memref<1x32xf32, #tpu.memory_space<vmem>>, vector<1x32xf32>
    %cst = arith.constant dense<0.000000e+00> : vector<16xf32>
    %3 = vector.multi_reduction <add>, %0, %cst [1] : vector<16x32xf32> to vector<16xf32>
    %4 = vector.shape_cast %3 : vector<16xf32> to vector<16x1xf32>
    %cst_5 = arith.constant 3.200000e+01 : f32
    %5 = vector.broadcast %cst_5 : f32 to vector<16x1xf32>
    %6 = arith.divf %4, %5 : vector<16x1xf32>
    %7 = vector.broadcast %6 : vector<16x1xf32> to vector<16x32xf32>
    %8 = arith.subf %0, %7 : vector<16x32xf32>
    %9 = arith.mulf %8, %8 : vector<16x32xf32>
    %cst_6 = arith.constant dense<0.000000e+00> : vector<16xf32>
    %10 = vector.multi_reduction <add>, %9, %cst_6 [1] : vector<16x32xf32> to vector<16xf32>
    %11 = vector.shape_cast %10 : vector<16xf32> to vector<16x1xf32>
    %cst_7 = arith.constant 3.200000e+01 : f32
    %12 = vector.broadcast %cst_7 : f32 to vector<16x1xf32>
    %13 = arith.divf %11, %12 : vector<16x1xf32>
    %cst_8 = arith.constant 9.99999996E-13 : f32
    %14 = vector.broadcast %cst_8 : f32 to vector<16x1xf32>
    %15 = arith.addf %13, %14 : vector<16x1xf32>
    %16 = math.rsqrt %15 : vector<16x1xf32>
    %17 = vector.broadcast %16 : vector<16x1xf32> to vector<16x32xf32>
    %18 = arith.mulf %8, %17 : vector<16x32xf32>
    %19 = vector.broadcast %1 : vector<1x32xf32> to vector<16x32xf32>
    %20 = arith.mulf %19, %18 : vector<16x32xf32>
    %21 = vector.broadcast %2 : vector<1x32xf32> to vector<16x32xf32>
    %22 = arith.addf %20, %21 : vector<16x32xf32>
    %c0_9 = arith.constant 0 : index
    %c0_10 = arith.constant 0 : index
    %23 = vector.load %arg3[%c0_9, %c0_10] : memref<32x96xf32, #tpu.memory_space<vmem>>, vector<32x96xf32>
    %cst_11 = arith.constant dense<0.000000e+00> : vector<16x96xf32>
    %24 = tpu.matmul %22, %23, %cst_11 {dimension_numbers = #tpu.dot_dimension_numbers<[1], [0], [0], [1], [0, 0, 1, 1], [], []>} : vector<16x32xf32>, vector<32x96xf32>, vector<16x96xf32> -> vector<16x96xf32>
    %c0_12 = arith.constant 0 : index
    %c0_13 = arith.constant 0 : index
    %25 = vector.load %arg4[%c0_12, %c0_13] : memref<1x96xf32, #tpu.memory_space<vmem>>, vector<1x96xf32>
    %26 = vector.broadcast %25 : vector<1x96xf32> to vector<16x96xf32>
    %27 = arith.addf %24, %26 : vector<16x96xf32>
    %28 = vector.extract_strided_slice %27 {offsets = [0, 0], sizes = [8, 24], strides = [1, 1]} : vector<16x96xf32> to vector<8x24xf32>
    %29 = vector.extract_strided_slice %27 {offsets = [0, 24], sizes = [8, 24], strides = [1, 1]} : vector<16x96xf32> to vector<8x24xf32>
    %30 = vector.extract_strided_slice %27 {offsets = [0, 48], sizes = [8, 24], strides = [1, 1]} : vector<16x96xf32> to vector<8x24xf32>
    %31 = vector.extract_strided_slice %27 {offsets = [0, 72], sizes = [8, 24], strides = [1, 1]} : vector<16x96xf32> to vector<8x24xf32>
    %32 = vector.extract_strided_slice %27 {offsets = [8, 0], sizes = [8, 24], strides = [1, 1]} : vector<16x96xf32> to vector<8x24xf32>
    %33 = vector.extract_strided_slice %27 {offsets = [8, 24], sizes = [8, 24], strides = [1, 1]} : vector<16x96xf32> to vector<8x24xf32>
    %34 = vector.extract_strided_slice %27 {offsets = [8, 48], sizes = [8, 24], strides = [1, 1]} : vector<16x96xf32> to vector<8x24xf32>
    %35 = vector.extract_strided_slice %27 {offsets = [8, 72], sizes = [8, 24], strides = [1, 1]} : vector<16x96xf32> to vector<8x24xf32>
    %36 = vector.shape_cast %28 : vector<8x24xf32> to vector<1x8x24xf32>
    %37 = vector.shape_cast %29 : vector<8x24xf32> to vector<1x8x24xf32>
    %38 = vector.shape_cast %30 : vector<8x24xf32> to vector<1x8x24xf32>
    %39 = vector.shape_cast %31 : vector<8x24xf32> to vector<1x8x24xf32>
    %40 = vector.shape_cast %32 : vector<8x24xf32> to vector<1x8x24xf32>
    %41 = vector.shape_cast %33 : vector<8x24xf32> to vector<1x8x24xf32>
    %42 = vector.shape_cast %34 : vector<8x24xf32> to vector<1x8x24xf32>
    %43 = vector.shape_cast %35 : vector<8x24xf32> to vector<1x8x24xf32>
    %44 = tpu.concatenate %36, %37, %38, %39, %40, %41, %42, %43 in 0 : vector<1x8x24xf32>, vector<1x8x24xf32>, vector<1x8x24xf32>, vector<1x8x24xf32>, vector<1x8x24xf32>, vector<1x8x24xf32>, vector<1x8x24xf32>, vector<1x8x24xf32> -> vector<8x8x24xf32>
    %45 = vector.extract_strided_slice %44 {offsets = [0, 0, 0], sizes = [8, 8, 8], strides = [1, 1, 1]} : vector<8x8x24xf32> to vector<8x8x8xf32>
    %46 = vector.extract_strided_slice %44 {offsets = [0, 0, 8], sizes = [8, 8, 8], strides = [1, 1, 1]} : vector<8x8x24xf32> to vector<8x8x8xf32>
    %47 = vector.extract_strided_slice %44 {offsets = [0, 0, 16], sizes = [8, 8, 8], strides = [1, 1, 1]} : vector<8x8x24xf32> to vector<8x8x8xf32>
    "tpu.trace_start"() <{level = 10 : i32, message = "gtd,gsd->gts"}> : () -> ()
    %cst_14 = arith.constant dense<0.000000e+00> : vector<8x8x8xf32>
    %48 = tpu.matmul %45, %46, %cst_14 {dimension_numbers = #tpu.dot_dimension_numbers<[2], [2], [1], [1], [0, 0, 0, 1, 1, 1], [0], [0]>} : vector<8x8x8xf32>, vector<8x8x8xf32>, vector<8x8x8xf32> -> vector<8x8x8xf32>
    "tpu.trace_stop"() : () -> ()
    %c0_15 = arith.constant 0 : index
    %c0_16 = arith.constant 0 : index
    %c0_17 = arith.constant 0 : index
    %49 = vector.load %arg5[%c0_15, %c0_16, %c0_17] : memref<8x1x8xf32, #tpu.memory_space<vmem>>, vector<8x1x8xf32>
    %50 = vector.broadcast %49 : vector<8x1x8xf32> to vector<8x8x8xf32>
    %51 = arith.mulf %45, %50 : vector<8x8x8xf32>
    %cst_18 = arith.constant dense<0.000000e+00> : vector<8x8xf32>
    %52 = vector.multi_reduction <add>, %51, %cst_18 [2] : vector<8x8x8xf32> to vector<8x8xf32>
    %53 = vector.shape_cast %52 : vector<8x8xf32> to vector<8x8x1xf32>
    %cst_19 = arith.constant dense<0xFF800000> : vector<8x8xf32>
    %54 = vector.multi_reduction <maximumf>, %48, %cst_19 [2] : vector<8x8x8xf32> to vector<8x8xf32>
    %55 = vector.shape_cast %54 : vector<8x8xf32> to vector<8x8x1xf32>
    %56 = arith.maximumf %55, %53 : vector<8x8x1xf32>
    %57 = vector.broadcast %56 : vector<8x8x1xf32> to vector<8x8x8xf32>
    %58 = arith.subf %48, %57 : vector<8x8x8xf32>
    %59 = math.exp %58 : vector<8x8x8xf32>
    %60 = arith.subf %53, %56 : vector<8x8x1xf32>
    %61 = math.exp %60 : vector<8x8x1xf32>
    %cst_20 = arith.constant dense<0.000000e+00> : vector<8x8xf32>
    %62 = vector.multi_reduction <add>, %59, %cst_20 [2] : vector<8x8x8xf32> to vector<8x8xf32>
    %63 = vector.shape_cast %62 : vector<8x8xf32> to vector<8x8x1xf32>
    %64 = arith.addf %63, %61 : vector<8x8x1xf32>
    %cst_21 = arith.constant 1.000000e+00 : f32
    %65 = vector.broadcast %cst_21 : f32 to vector<8x8x1xf32>
    %66 = arith.divf %65, %64 : vector<8x8x1xf32>
    %67 = vector.broadcast %66 : vector<8x8x1xf32> to vector<8x8x8xf32>
    %68 = arith.mulf %59, %67 : vector<8x8x8xf32>
    %69 = arith.mulf %61, %66 : vector<8x8x1xf32>
    "tpu.trace_start"() <{level = 10 : i32, message = "gts,gsd->gtd"}> : () -> ()
    %cst_22 = arith.constant dense<0.000000e+00> : vector<8x8x8xf32>
    %70 = tpu.matmul %68, %47, %cst_22 {dimension_numbers = #tpu.dot_dimension_numbers<[2], [1], [1], [2], [0, 0, 0, 1, 1, 2], [0], [0]>} : vector<8x8x8xf32>, vector<8x8x8xf32>, vector<8x8x8xf32> -> vector<8x8x8xf32>
    "tpu.trace_stop"() : () -> ()
    %c0_23 = arith.constant 0 : index
    %c0_24 = arith.constant 0 : index
    %c0_25 = arith.constant 0 : index
    %71 = vector.load %arg6[%c0_23, %c0_24, %c0_25] : memref<8x1x8xf32, #tpu.memory_space<vmem>>, vector<8x1x8xf32>
    %72 = vector.broadcast %69 : vector<8x8x1xf32> to vector<8x8x8xf32>
    %73 = vector.broadcast %71 : vector<8x1x8xf32> to vector<8x8x8xf32>
    %74 = arith.mulf %72, %73 : vector<8x8x8xf32>
    %75 = arith.addf %70, %74 : vector<8x8x8xf32>
    %76 = vector.extract_strided_slice %75 {offsets = [0, 0, 0], sizes = [1, 8, 8], strides = [1, 1, 1]} : vector<8x8x8xf32> to vector<1x8x8xf32>
    %77 = vector.shape_cast %76 : vector<1x8x8xf32> to vector<8x8xf32>
    %78 = vector.extract_strided_slice %75 {offsets = [1, 0, 0], sizes = [1, 8, 8], strides = [1, 1, 1]} : vector<8x8x8xf32> to vector<1x8x8xf32>
    %79 = vector.shape_cast %78 : vector<1x8x8xf32> to vector<8x8xf32>
    %80 = vector.extract_strided_slice %75 {offsets = [2, 0, 0], sizes = [1, 8, 8], strides = [1, 1, 1]} : vector<8x8x8xf32> to vector<1x8x8xf32>
    %81 = vector.shape_cast %80 : vector<1x8x8xf32> to vector<8x8xf32>
    %82 = vector.extract_strided_slice %75 {offsets = [3, 0, 0], sizes = [1, 8, 8], strides = [1, 1, 1]} : vector<8x8x8xf32> to vector<1x8x8xf32>
    %83 = vector.shape_cast %82 : vector<1x8x8xf32> to vector<8x8xf32>
    %84 = tpu.concatenate %77, %79, %81, %83 in 1 : vector<8x8xf32>, vector<8x8xf32>, vector<8x8xf32>, vector<8x8xf32> -> vector<8x32xf32>
    %85 = vector.extract_strided_slice %75 {offsets = [4, 0, 0], sizes = [1, 8, 8], strides = [1, 1, 1]} : vector<8x8x8xf32> to vector<1x8x8xf32>
    %86 = vector.shape_cast %85 : vector<1x8x8xf32> to vector<8x8xf32>
    %87 = vector.extract_strided_slice %75 {offsets = [5, 0, 0], sizes = [1, 8, 8], strides = [1, 1, 1]} : vector<8x8x8xf32> to vector<1x8x8xf32>
    %88 = vector.shape_cast %87 : vector<1x8x8xf32> to vector<8x8xf32>
    %89 = vector.extract_strided_slice %75 {offsets = [6, 0, 0], sizes = [1, 8, 8], strides = [1, 1, 1]} : vector<8x8x8xf32> to vector<1x8x8xf32>
    %90 = vector.shape_cast %89 : vector<1x8x8xf32> to vector<8x8xf32>
    %91 = vector.extract_strided_slice %75 {offsets = [7, 0, 0], sizes = [1, 8, 8], strides = [1, 1, 1]} : vector<8x8x8xf32> to vector<1x8x8xf32>
    %92 = vector.shape_cast %91 : vector<1x8x8xf32> to vector<8x8xf32>
    %93 = tpu.concatenate %86, %88, %90, %92 in 1 : vector<8x8xf32>, vector<8x8xf32>, vector<8x8xf32>, vector<8x8xf32> -> vector<8x32xf32>
    %94 = tpu.concatenate %84, %93 in 0 : vector<8x32xf32>, vector<8x32xf32> -> vector<16x32xf32>
    %c0_26 = arith.constant 0 : index
    %c0_27 = arith.constant 0 : index
    %95 = vector.load %arg7[%c0_26, %c0_27] : memref<32x32xf32, #tpu.memory_space<vmem>>, vector<32x32xf32>
    %cst_28 = arith.constant dense<0.000000e+00> : vector<16x32xf32>
    %96 = tpu.matmul %94, %95, %cst_28 {dimension_numbers = #tpu.dot_dimension_numbers<[1], [0], [0], [1], [0, 0, 1, 1], [], []>} : vector<16x32xf32>, vector<32x32xf32>, vector<16x32xf32> -> vector<16x32xf32>
    %c0_29 = arith.constant 0 : index
    %c0_30 = arith.constant 0 : index
    %97 = vector.load %arg8[%c0_29, %c0_30] : memref<1x32xf32, #tpu.memory_space<vmem>>, vector<1x32xf32>
    %98 = vector.broadcast %97 : vector<1x32xf32> to vector<16x32xf32>
    %99 = arith.addf %96, %98 : vector<16x32xf32>
    %100 = arith.addf %0, %99 : vector<16x32xf32>
    %101 = vector.shape_cast %68 : vector<8x8x8xf32> to vector<2x4x8x8xf32>
    %cst_31 = arith.constant dense<0.000000e+00> : vector<2x8x8xf32>
    %102 = vector.multi_reduction <add>, %101, %cst_31 [1] : vector<2x4x8x8xf32> to vector<2x8x8xf32>
    %cst_32 = arith.constant 4.000000e+00 : f32
    %103 = vector.broadcast %cst_32 : f32 to vector<2x8x8xf32>
    %104 = arith.divf %102, %103 : vector<2x8x8xf32>
    %105 = vector.shape_cast %69 : vector<8x8x1xf32> to vector<2x4x8x1xf32>
    %cst_33 = arith.constant dense<0.000000e+00> : vector<2x8x1xf32>
    %106 = vector.multi_reduction <add>, %105, %cst_33 [1] : vector<2x4x8x1xf32> to vector<2x8x1xf32>
    %cst_34 = arith.constant 4.000000e+00 : f32
    %107 = vector.broadcast %cst_34 : f32 to vector<2x8x1xf32>
    %108 = arith.divf %106, %107 : vector<2x8x1xf32>
    %cst_35 = arith.constant 0.000000e+00 : f32
    %109 = vector.broadcast %cst_35 : f32 to vector<2x8x119xf32>
    %110 = tpu.concatenate %104, %108, %109 in 2 : vector<2x8x8xf32>, vector<2x8x1xf32>, vector<2x8x119xf32> -> vector<2x8x128xf32>
    %c0_36 = arith.constant 0 : index
    %c0_37 = arith.constant 0 : index
    %c0_38 = arith.constant 0 : index
    %111 = vector.load %arg16[%c0_36, %c0_37, %c0_38] : memref<2x8x128xf32, #tpu.memory_space<vmem>>, vector<2x8x128xf32>
    tpu.vector_store %arg16[%c0_36, %c0_37, %c0_38], %110 {strides = array<i32>} : memref<2x8x128xf32, #tpu.memory_space<vmem>>, vector<2x8x128xf32>,
    %c0_39 = arith.constant 0 : index
    %c0_40 = arith.constant 0 : index
    %112 = vector.load %arg9[%c0_39, %c0_40] : memref<1x32xf32, #tpu.memory_space<vmem>>, vector<1x32xf32>
    %c0_41 = arith.constant 0 : index
    %c0_42 = arith.constant 0 : index
    %113 = vector.load %arg10[%c0_41, %c0_42] : memref<1x32xf32, #tpu.memory_space<vmem>>, vector<1x32xf32>
    %cst_43 = arith.constant dense<0.000000e+00> : vector<16xf32>
    %114 = vector.multi_reduction <add>, %100, %cst_43 [1] : vector<16x32xf32> to vector<16xf32>
    %115 = vector.shape_cast %114 : vector<16xf32> to vector<16x1xf32>
    %cst_44 = arith.constant 3.200000e+01 : f32
    %116 = vector.broadcast %cst_44 : f32 to vector<16x1xf32>
    %117 = arith.divf %115, %116 : vector<16x1xf32>
    %118 = vector.broadcast %117 : vector<16x1xf32> to vector<16x32xf32>
    %119 = arith.subf %100, %118 : vector<16x32xf32>
    %120 = arith.mulf %119, %119 : vector<16x32xf32>
    %cst_45 = arith.constant dense<0.000000e+00> : vector<16xf32>
    %121 = vector.multi_reduction <add>, %120, %cst_45 [1] : vector<16x32xf32> to vector<16xf32>
    %122 = vector.shape_cast %121 : vector<16xf32> to vector<16x1xf32>
    %cst_46 = arith.constant 3.200000e+01 : f32
    %123 = vector.broadcast %cst_46 : f32 to vector<16x1xf32>
    %124 = arith.divf %122, %123 : vector<16x1xf32>
    %cst_47 = arith.constant 9.99999996E-13 : f32
    %125 = vector.broadcast %cst_47 : f32 to vector<16x1xf32>
    %126 = arith.addf %124, %125 : vector<16x1xf32>
    %127 = math.rsqrt %126 : vector<16x1xf32>
    %128 = vector.broadcast %127 : vector<16x1xf32> to vector<16x32xf32>
    %129 = arith.mulf %119, %128 : vector<16x32xf32>
    %130 = vector.broadcast %112 : vector<1x32xf32> to vector<16x32xf32>
    %131 = arith.mulf %130, %129 : vector<16x32xf32>
    %132 = vector.broadcast %113 : vector<1x32xf32> to vector<16x32xf32>
    %133 = arith.addf %131, %132 : vector<16x32xf32>
    %c0_48 = arith.constant 0 : index
    %c0_49 = arith.constant 0 : index
    %134 = vector.load %arg11[%c0_48, %c0_49] : memref<32x64xf32, #tpu.memory_space<vmem>>, vector<32x64xf32>
    %cst_50 = arith.constant dense<0.000000e+00> : vector<16x64xf32>
    %135 = tpu.matmul %133, %134, %cst_50 {dimension_numbers = #tpu.dot_dimension_numbers<[1], [0], [0], [1], [0, 0, 1, 1], [], []>} : vector<16x32xf32>, vector<32x64xf32>, vector<16x64xf32> -> vector<16x64xf32>
    %c0_51 = arith.constant 0 : index
    %c0_52 = arith.constant 0 : index
    %136 = vector.load %arg12[%c0_51, %c0_52] : memref<1x64xf32, #tpu.memory_space<vmem>>, vector<1x64xf32>
    %137 = vector.broadcast %136 : vector<1x64xf32> to vector<16x64xf32>
    %138 = arith.addf %135, %137 : vector<16x64xf32>
    %cst_53 = arith.constant 5.000000e-01 : f32
    %139 = vector.broadcast %cst_53 : f32 to vector<16x64xf32>
    %140 = arith.mulf %138, %139 : vector<16x64xf32>
    %cst_54 = arith.constant 0.707106769 : f32
    %141 = vector.broadcast %cst_54 : f32 to vector<16x64xf32>
    %142 = arith.mulf %138, %141 : vector<16x64xf32>
    %143 = math.absf %142 : vector<16x64xf32>
    %cst_55 = arith.constant 0.327591091 : f32
    %144 = vector.broadcast %cst_55 : f32 to vector<16x64xf32>
    %145 = arith.mulf %144, %143 : vector<16x64xf32>
    %cst_56 = arith.constant 1.000000e+00 : f32
    %146 = vector.broadcast %cst_56 : f32 to vector<16x64xf32>
    %147 = arith.addf %146, %145 : vector<16x64xf32>
    %cst_57 = arith.constant 1.000000e+00 : f32
    %148 = vector.broadcast %cst_57 : f32 to vector<16x64xf32>
    %149 = arith.divf %148, %147 : vector<16x64xf32>
    %cst_58 = arith.constant 1.06140542 : f32
    %150 = vector.broadcast %cst_58 : f32 to vector<16x64xf32>
    %151 = arith.mulf %150, %149 : vector<16x64xf32>
    %cst_59 = arith.constant -1.45315206 : f32
    %152 = vector.broadcast %cst_59 : f32 to vector<16x64xf32>
    %153 = arith.addf %151, %152 : vector<16x64xf32>
    %154 = arith.mulf %153, %149 : vector<16x64xf32>
    %cst_60 = arith.constant 1.42141378 : f32
    %155 = vector.broadcast %cst_60 : f32 to vector<16x64xf32>
    %156 = arith.addf %154, %155 : vector<16x64xf32>
    %157 = arith.mulf %156, %149 : vector<16x64xf32>
    %cst_61 = arith.constant -0.284496725 : f32
    %158 = vector.broadcast %cst_61 : f32 to vector<16x64xf32>
    %159 = arith.addf %157, %158 : vector<16x64xf32>
    %160 = arith.mulf %159, %149 : vector<16x64xf32>
    %cst_62 = arith.constant 0.254829586 : f32
    %161 = vector.broadcast %cst_62 : f32 to vector<16x64xf32>
    %162 = arith.addf %160, %161 : vector<16x64xf32>
    %163 = arith.mulf %162, %149 : vector<16x64xf32>
    %cst_63 = arith.constant 0.000000e+00 : f32
    %164 = vector.broadcast %cst_63 : f32 to vector<16x64xf32>
    %165 = arith.subf %164, %143 : vector<16x64xf32>
    %166 = arith.mulf %165, %143 : vector<16x64xf32>
    %167 = math.exp %166 : vector<16x64xf32>
    %168 = arith.mulf %163, %167 : vector<16x64xf32>
    %cst_64 = arith.constant 1.000000e+00 : f32
    %169 = vector.broadcast %cst_64 : f32 to vector<16x64xf32>
    %170 = arith.subf %169, %168 : vector<16x64xf32>
    %cst_65 = arith.constant 0.000000e+00 : f32
    %171 = vector.broadcast %cst_65 : f32 to vector<16x64xf32>
    %172 = arith.cmpf olt, %142, %171 : vector<16x64xf32>
    %cst_66 = arith.constant 0.000000e+00 : f32
    %173 = vector.broadcast %cst_66 : f32 to vector<16x64xf32>
    %174 = arith.subf %173, %170 : vector<16x64xf32>
    %175 = arith.select %172, %174, %170 : vector<16x64xi1>, vector<16x64xf32>
    %cst_67 = arith.constant 1.000000e+00 : f32
    %176 = vector.broadcast %cst_67 : f32 to vector<16x64xf32>
    %177 = arith.addf %176, %175 : vector<16x64xf32>
    %178 = arith.mulf %140, %177 : vector<16x64xf32>
    %c0_68 = arith.constant 0 : index
    %c0_69 = arith.constant 0 : index
    %179 = vector.load %arg13[%c0_68, %c0_69] : memref<64x32xf32, #tpu.memory_space<vmem>>, vector<64x32xf32>
    %cst_70 = arith.constant dense<0.000000e+00> : vector<16x32xf32>
    %180 = tpu.matmul %178, %179, %cst_70 {dimension_numbers = #tpu.dot_dimension_numbers<[1], [0], [0], [1], [0, 0, 1, 1], [], []>} : vector<16x64xf32>, vector<64x32xf32>, vector<16x32xf32> -> vector<16x32xf32>
    %c0_71 = arith.constant 0 : index
    %c0_72 = arith.constant 0 : index
    %181 = vector.load %arg14[%c0_71, %c0_72] : memref<1x32xf32, #tpu.memory_space<vmem>>, vector<1x32xf32>
    %182 = vector.broadcast %181 : vector<1x32xf32> to vector<16x32xf32>
    %183 = arith.addf %180, %182 : vector<16x32xf32>
    %184 = arith.addf %100, %183 : vector<16x32xf32>
    %c0_73 = arith.constant 0 : index
    %c0_74 = arith.constant 0 : index
    %185 = vector.load %arg15[%c0_73, %c0_74] : memref<16x32xf32, #tpu.memory_space<vmem>>, vector<16x32xf32>
    tpu.vector_store %arg15[%c0_73, %c0_74], %184 {strides = array<i32>} : memref<16x32xf32, #tpu.memory_space<vmem>>, vector<16x32xf32>,
    return
  }
}

</mosaic_0001>

<llo_original>
// kernel: tpu_custom_call.1
$region0: #{tpu_custom_call.1}
  #allocation0 [shape = 'u32[]', space=smem, size = 0x4, offset = 0x4, fixed_abs, tag = 'smem constant byte address 0x4 - core index']
  #allocation1 [shape = 'u32[72,128]{1,0:T(1,128)}', space=vmem, size = 0x9000, scoped, tag = 'internal scratch']
  %s0 = inlined_call_operand.hbm [shape: f32[16,32], index: 0, kind: input, shape index: {}]
  %s1 = inlined_call_operand.hbm [shape: f32[1,32], index: 1, kind: input, shape index: {}]
  %s2 = inlined_call_operand.vmem [shape: f32[1,32], index: 2, kind: input, shape index: {}]
  %s3 = inlined_call_operand.vmem [shape: f32[32,96], index: 3, kind: input, shape index: {}]
  %s4 = inlined_call_operand.vmem [shape: f32[1,96], index: 4, kind: input, shape index: {}]
  %s5 = inlined_call_operand.hbm [shape: f32[8,1,8], index: 5, kind: input, shape index: {}]
  %s6 = inlined_call_operand.hbm [shape: f32[8,1,8], index: 6, kind: input, shape index: {}]
  %s7 = inlined_call_operand.vmem [shape: f32[32,32], index: 7, kind: input, shape index: {}]
  %s8 = inlined_call_operand.vmem [shape: f32[1,32], index: 8, kind: input, shape index: {}]
  %s9 = inlined_call_operand.vmem [shape: f32[1,32], index: 9, kind: input, shape index: {}]
  %s10 = inlined_call_operand.vmem [shape: f32[1,32], index: 10, kind: input, shape index: {}]
  %s11 = inlined_call_operand.vmem [shape: f32[32,64], index: 11, kind: input, shape index: {}]
  %s12 = inlined_call_operand.vmem [shape: f32[1,64], index: 12, kind: input, shape index: {}]
  %s13 = inlined_call_operand.vmem [shape: f32[64,32], index: 13, kind: input, shape index: {}]
  %s14 = inlined_call_operand.vmem [shape: f32[1,32], index: 14, kind: input, shape index: {}]
  %s15 = inlined_call_operand.hbm [shape: f32[16,32], index: 15, kind: output, shape index: {0}]
  %s16 = inlined_call_operand.hbm [shape: f32[2,8,128], index: 16, kind: output, shape index: {1}]
  %17 = xla_tuple %s15, %s16
  %s18 = sld [smem:[#allocation0]]
  $region94: #{tpu_custom_call.1} parent=0
    _
  %s20 = ssub.s32 1, %s18
  %s21 = scalar_select 0, %s20, %s18
  $region1: #{tpu_custom_call.1} parent=0
    #allocation2 [shape = 'u8[8192]{0}', space=vmem, size = 0x2000, scoped, tag = 'input window, operand 0, single buffered']
    #allocation3 [shape = 's32[1]{0}', space=sflag, size = 0x4, scoped, tag = 'scoped memory for tpu_custom_call.1']
    #allocation4 [shape = 's32[1]{0}', space=sflag, size = 0x4, scoped, tag = 'scoped memory for tpu_custom_call.1']
    #allocation5 [shape = 'u8[512]{0}', space=vmem, size = 0x400, scoped, tag = 'input window, operand 1, single buffered']
    #allocation6 [shape = 's32[1]{0}', space=sflag, size = 0x4, scoped, tag = 'scoped memory for tpu_custom_call.1']
    #allocation7 [shape = 'u8[4096]{0}', space=vmem, size = 0x1000, scoped, tag = 'input window, operand 5, single buffered']
    #allocation8 [shape = 'u8[4096]{0}', space=vmem, size = 0x1000, scoped, tag = 'input window, operand 6, single buffered']
    #allocation9 [shape = 's32[1]{0}', space=sflag, size = 0x4, scoped, tag = 'scoped memory for tpu_custom_call.1']
    #allocation10 [shape = 'u8[8192]{0}', space=vmem, size = 0x2000, scoped, tag = 'output window, operand 0, single buffered']
    #allocation11 [shape = 'u8[8192]{0}', space=vmem, size = 0x2000, scoped, tag = 'output window, operand 1, single buffered']
    #allocation12 [shape = 's32[1]{0}', space=sflag, size = 0x4, scoped, tag = 'scoped memory for tpu_custom_call.1']
    %22 = vsyncpa [#allocation3], 0
    %23 = vsyncpa [#allocation6], 0
    %24 = vsyncpa [#allocation9], 0
    %25 = vsyncpa [#allocation4], 0
    %26 = vsyncpa [#allocation12], 0
    // Predicated region
    $region2: #{tpu_custom_call.1} parent=1 // pred_check
      _
    $region3: #{tpu_custom_call.1} parent=1 // pred_check_branch
      %28 = sbr.rel (0) target = $region5
    $region4: #{tpu_custom_call.1} parent=1 // pred_region
      %30 = vsyncadd [#allocation3], 0
      %s31 = sshll.u32 %s0, 4
      %s32 = int_to_ptr.hbm [resolvable:$true] %s31
      %s33 = sshll.u32 [#allocation2], 4
      %s34 = int_to_ptr.vmem [resolvable:$true] %s33
      %39 = dma.hbm_to_vmem [thread:$0]  %s32, 256, %s34, [#allocation3], 128, 128, 8
    $region5: #{tpu_custom_call.1} parent=1 // pred_fallthru
      _
    // Predicated region
    $region6: #{tpu_custom_call.1} parent=1 // pred_check
      _
    $region7: #{tpu_custom_call.1} parent=1 // pred_check_branch
      %41 = sbr.rel (0) target = $region9
    $region8: #{tpu_custom_call.1} parent=1 // pred_region
      %43 = vsyncadd [#allocation6], 0
      %s45 = sshll.u32 %s1, 4
      %s46 = int_to_ptr.hbm [resolvable:$true] %s45
      %s47 = sshll.u32 [#allocation5], 4
      %s48 = int_to_ptr.vmem [resolvable:$true] %s47
      %50 = dma.hbm_to_vmem [thread:$0]  %s46, 16, %s48, [#allocation6]
    $region9: #{tpu_custom_call.1} parent=1 // pred_fallthru
      _
    // Predicated region
    $region10: #{tpu_custom_call.1} parent=1 // pred_check
      _
    $region11: #{tpu_custom_call.1} parent=1 // pred_check_branch
      %52 = sbr.rel (0) target = $region13
    $region12: #{tpu_custom_call.1} parent=1 // pred_region
      _
    $region13: #{tpu_custom_call.1} parent=1 // pred_fallthru
      _
    // Predicated region
    $region14: #{tpu_custom_call.1} parent=1 // pred_check
      _
    $region15: #{tpu_custom_call.1} parent=1 // pred_check_branch
      %54 = sbr.rel (0) target = $region17
    $region16: #{tpu_custom_call.1} parent=1 // pred_region
      _
    $region17: #{tpu_custom_call.1} parent=1 // pred_fallthru
      _
    // Predicated region
    $region18: #{tpu_custom_call.1} parent=1 // pred_check
      _
    $region19: #{tpu_custom_call.1} parent=1 // pred_check_branch
      %56 = sbr.rel (0) target = $region21
    $region20: #{tpu_custom_call.1} parent=1 // pred_region
      _
    $region21: #{tpu_custom_call.1} parent=1 // pred_fallthru
      _
    // Predicated region
    $region22: #{tpu_custom_call.1} parent=1 // pred_check
      _
    $region23: #{tpu_custom_call.1} parent=1 // pred_check_branch
      %58 = sbr.rel (0) target = $region25
    $region24: #{tpu_custom_call.1} parent=1 // pred_region
      %60 = vsyncadd [#allocation6], 0
      %s61 = sshll.u32 %s5, 4
      %s62 = int_to_ptr.hbm [resolvable:$true] %s61
      %s63 = sshll.u32 [#allocation7], 4
      %s64 = int_to_ptr.vmem [resolvable:$true] %s63
      %69 = dma.hbm_to_vmem [thread:$0]  %s62, 128, %s64, [#allocation6], 16, 16, 1
    $region25: #{tpu_custom_call.1} parent=1 // pred_fallthru
      _
    // Predicated region
    $region26: #{tpu_custom_call.1} parent=1 // pred_check
      _
    $region27: #{tpu_custom_call.1} parent=1 // pred_check_branch
      %71 = sbr.rel (0) target = $region29
    $region28: #{tpu_custom_call.1} parent=1 // pred_region
      %73 = vsyncadd [#allocation9], 0
      %s74 = sshll.u32 %s6, 4
      %s75 = int_to_ptr.hbm [resolvable:$true] %s74
      %s76 = sshll.u32 [#allocation8], 4
      %s77 = int_to_ptr.vmem [resolvable:$true] %s76
      %82 = dma.hbm_to_vmem [thread:$0]  %s75, 128, %s77, [#allocation9], 16, 16, 1
    $region29: #{tpu_custom_call.1} parent=1 // pred_fallthru
      _
    // Predicated region
    $region30: #{tpu_custom_call.1} parent=1 // pred_check
      _
    $region31: #{tpu_custom_call.1} parent=1 // pred_check_branch
      %84 = sbr.rel (0) target = $region33
    $region32: #{tpu_custom_call.1} parent=1 // pred_region
      _
    $region33: #{tpu_custom_call.1} parent=1 // pred_fallthru
      _
    // Predicated region
    $region34: #{tpu_custom_call.1} parent=1 // pred_check
      _
    $region35: #{tpu_custom_call.1} parent=1 // pred_check_branch
      %86 = sbr.rel (0) target = $region37
    $region36: #{tpu_custom_call.1} parent=1 // pred_region
      _
    $region37: #{tpu_custom_call.1} parent=1 // pred_fallthru
      _
    // Predicated region
    $region38: #{tpu_custom_call.1} parent=1 // pred_check
      _
    $region39: #{tpu_custom_call.1} parent=1 // pred_check_branch
      %88 = sbr.rel (0) target = $region41
    $region40: #{tpu_custom_call.1} parent=1 // pred_region
      _
    $region41: #{tpu_custom_call.1} parent=1 // pred_fallthru
      _
    // Predicated region
    $region42: #{tpu_custom_call.1} parent=1 // pred_check
      _
    $region43: #{tpu_custom_call.1} parent=1 // pred_check_branch
      %90 = sbr.rel (0) target = $region45
    $region44: #{tpu_custom_call.1} parent=1 // pred_region
      _
    $region45: #{tpu_custom_call.1} parent=1 // pred_fallthru
      _
    // Predicated region
    $region46: #{tpu_custom_call.1} parent=1 // pred_check
      _
    $region47: #{tpu_custom_call.1} parent=1 // pred_check_branch
      %92 = sbr.rel (0) target = $region49
    $region48: #{tpu_custom_call.1} parent=1 // pred_region
      _
    $region49: #{tpu_custom_call.1} parent=1 // pred_fallthru
      _
    // Predicated region
    $region50: #{tpu_custom_call.1} parent=1 // pred_check
      _
    $region51: #{tpu_custom_call.1} parent=1 // pred_check_branch
      %94 = sbr.rel (0) target = $region53
    $region52: #{tpu_custom_call.1} parent=1 // pred_region
      _
    $region53: #{tpu_custom_call.1} parent=1 // pred_fallthru
      _
    // Predicated region
    $region54: #{tpu_custom_call.1} parent=1 // pred_check
      _
    $region55: #{tpu_custom_call.1} parent=1 // pred_check_branch
      %96 = sbr.rel (0) target = $region57
    $region56: #{tpu_custom_call.1} parent=1 // pred_region
      _
    $region57: #{tpu_custom_call.1} parent=1 // pred_fallthru
      _
    // Predicated region
    $region58: #{tpu_custom_call.1} parent=1 // pred_check
      _
    $region59: #{tpu_custom_call.1} parent=1 // pred_check_branch
      %98 = sbr.rel (0) target = $region61
    $region60: #{tpu_custom_call.1} parent=1 // pred_region
      _
    $region61: #{tpu_custom_call.1} parent=1 // pred_fallthru
      _
    // Predicated region
    $region62: #{tpu_custom_call.1} parent=1 // pred_check
      _
    $region63: #{tpu_custom_call.1} parent=1 // pred_check_branch
      %100 = sbr.rel (0) target = $region65
    $region64: #{tpu_custom_call.1} parent=1 // pred_region
      %102 = dma.done [#allocation3], 256
    $region65: #{tpu_custom_call.1} parent=1 // pred_fallthru
      _
    // Predicated region
    $region66: #{tpu_custom_call.1} parent=1 // pred_check
      _
    $region67: #{tpu_custom_call.1} parent=1 // pred_check_branch
      %104 = sbr.rel (0) target = $region69
    $region68: #{tpu_custom_call.1} parent=1 // pred_region
      %106 = dma.done [#allocation6], 16
    $region69: #{tpu_custom_call.1} parent=1 // pred_fallthru
      _
    // Predicated region
    $region70: #{tpu_custom_call.1} parent=1 // pred_check
      _
    $region71: #{tpu_custom_call.1} parent=1 // pred_check_branch
      %108 = sbr.rel (0) target = $region73
    $region72: #{tpu_custom_call.1} parent=1 // pred_region
      %110 = dma.done [#allocation6], 128
    $region73: #{tpu_custom_call.1} parent=1 // pred_fallthru
      _
    // Predicated region
    $region74: #{tpu_custom_call.1} parent=1 // pred_check
      _
    $region75: #{tpu_custom_call.1} parent=1 // pred_check_branch
      %112 = sbr.rel (0) target = $region77
    $region76: #{tpu_custom_call.1} parent=1 // pred_region
      %114 = dma.done [#allocation9], 128
    $region77: #{tpu_custom_call.1} parent=1 // pred_fallthru
      _
    %v115 = vld [vmem:[#allocation2] sm:$0xff]
    %v116 = vld [vmem:[#allocation2 + $0x8] sm:$0xff]
    %v117 = vld [vmem:[#allocation5] sm:$0x1]
    %v118 = vld [vmem:[%s2] sm:$0x1]
    %vm119 = vcmask 261120
    %v120 = vsel %vm119, %v115, 0.0
    %121 = vadd.xlane.f32.xlu0 %v120
    %v122 = vpop.xlane.xlu0 %121
    %v123 = vsel %vm119, %v116, 0.0
    %124 = vadd.xlane.f32.xlu0 %v123
    %v125 = vpop.xlane.xlu0 %124
    %v126 = vrcp.pop 32.0
    %v127 = vmul.f32 32.0, %v126
    %v128 = vsub.f32 1.0, %v127
    %v129 = vmul.f32 %v126, %v128
    %v130 = vadd.f32 %v126, %v129
    %vm131 = vweird.f32 %v126
    %v132 = vsel %vm131, %v126, %v130
    %v133 = vmul.f32 %v122, %v132
    %v134 = vmul.f32 %v125, %v132
    %v135 = vsub.f32 %v115, %v133
    %v136 = vsub.f32 %v116, %v134
    %v137 = vmul.f32 %v135, %v135
    %v138 = vmul.f32 %v136, %v136
    %v139 = vsel %vm119, %v137, 0.0
    %140 = vadd.xlane.f32.xlu0 %v139
    %v141 = vpop.xlane.xlu0 %140
    %v142 = vsel %vm119, %v138, 0.0
    %143 = vadd.xlane.f32.xlu0 %v142
    %v144 = vpop.xlane.xlu0 %143
    %v145 = vmul.f32 %v141, %v132
    %v146 = vmul.f32 %v144, %v132
    %v147 = vadd.f32 %v145, 1e-12
    %v148 = vadd.f32 %v146, 1e-12
    %v149 = vrsqrt.pop %v147
    %v150 = vmul.f32 %v149, %v147
    %v151 = vmul.f32 %v150, %v149
    %v152 = vmul.f32 0.5, %v151
    %v153 = vsub.f32 1.5, %v152
    %v154 = vmul.f32 %v149, %v153
    %vm155 = vweird.f32 %v147
    %vm156 = vweird.f32 %v149
    %vm157 = vmor %vm155, %vm156
    %v158 = vsel %vm157, %v149, %v154
    %v159 = vrsqrt.pop %v148
    %v160 = vmul.f32 %v159, %v148
    %v161 = vmul.f32 %v160, %v159
    %v162 = vmul.f32 0.5, %v161
    %v163 = vsub.f32 1.5, %v162
    %v164 = vmul.f32 %v159, %v163
    %vm165 = vweird.f32 %v148
    %vm166 = vweird.f32 %v159
    %vm167 = vmor %vm165, %vm166
    %v168 = vsel %vm167, %v159, %v164
    %v169 = vmul.f32 %v135, %v158
    %v170 = vmul.f32 %v136, %v168
    %v172 = vperm.slane %v117, 0
    %v174 = vmul.f32 %v172, %v169
    %v175 = vmul.f32 %v172, %v170
    %v177 = vperm.slane %v118, 0
    %v179 = vadd.f32 %v174, %v177
    %v180 = vadd.f32 %v175, %v177
    %v181 = vld [vmem:[%s3] sm:$0xff]
    %v182 = vld [vmem:[%s3 + $0x8] sm:$0xff]
    %v183 = vld [vmem:[%s3 + $0x10] sm:$0xff]
    %v184 = vld [vmem:[%s3 + $0x18] sm:$0xff]
    %v185 = vld [vmem:[%s4] sm:$0x1]
    %v187 = vperm.slane %v185, 0
    %v190 = vsel %vm119, %v179, 0
    %v193 = vsel %vm119, %v180, 0
    %195 = vmatpush.msra.mxu0 0.0
    %196 = vmatpush.msra.mxu0 0.0
    %197 = vmatpush.msra.mxu0 0.0
    %198 = vmatpush.msra.mxu0 0.0
    %199 = vmatpush.msra.mxu0 0.0
    %200 = vmatpush.msra.mxu0 0.0
    %201 = vmatpush.msra.mxu0 0.0
    %202 = vmatpush.msra.mxu0 0.0
    %203 = vmatpush.msra.mxu0 0.0
    %204 = vmatpush.msra.mxu0 0.0
    %205 = vmatpush.msra.mxu0 0.0
    %206 = vmatpush.msra.mxu0 0.0
    %207 = vmatpush.msra.mxu0 %v184
    %208 = vmatpush.msra.mxu0 %v183
    %209 = vmatpush.msra.mxu0 %v182
    %210 = vmatpush.msra.mxu0 %v181
    %211 = vmatmul.f32.gmra.mxu0 %v190
    %v212 = vpop.f32.mrf.mxu0
    %v213 = vadd.f32 %v187, %v212
    %214 = vmatmul.f32.gmra.mxu0 %v193
    %v215 = vpop.f32.mrf.mxu0
    %v216 = vadd.f32 %v187, %v215
    %217 = vdwg.mxu0
    %219 = vrot.lane.b32.xlu0 %v213, 104
    %v220 = vpop.permute.xlu0 %219
    %222 = vrot.lane.b32.xlu0 %v213, 80
    %v223 = vpop.permute.xlu0 %222
    %225 = vrot.lane.b32.xlu0 %v213, 56
    %v226 = vpop.permute.xlu0 %225
    %229 = vrot.lane.b32.xlu0 %v216, 104
    %v230 = vpop.permute.xlu0 %229
    %232 = vrot.lane.b32.xlu0 %v216, 80
    %v233 = vpop.permute.xlu0 %232
    %235 = vrot.lane.b32.xlu0 %v216, 56
    %v236 = vpop.permute.xlu0 %235
    %238 = vrot.lane.b32.xlu0 %v213, 120
    %v239 = vpop.permute.xlu0 %238
    %vm240 = vcmask 64512
    %v241 = vsel %vm240, %v213, 0
    %v243 = vsel %vm240, %v239, 0
    %245 = vmatpush.xpose.msra.mxu0 0.0
    %246 = vmatpush.xpose.msra.mxu0 0.0
    %247 = vmatpush.xpose.msra.mxu0 0.0
    %248 = vmatpush.xpose.msra.mxu0 0.0
    %249 = vmatpush.xpose.msra.mxu0 0.0
    %250 = vmatpush.xpose.msra.mxu0 0.0
    %251 = vmatpush.xpose.msra.mxu0 0.0
    %252 = vmatpush.xpose.msra.mxu0 0.0
    %253 = vmatpush.xpose.msra.mxu0 0.0
    %254 = vmatpush.xpose.msra.mxu0 0.0
    %255 = vmatpush.xpose.msra.mxu0 0.0
    %256 = vmatpush.xpose.msra.mxu0 0.0
    %257 = vmatpush.xpose.msra.mxu0 0.0
    %258 = vmatpush.xpose.msra.mxu0 0.0
    %259 = vmatpush.xpose.msra.mxu0 0.0
    %260 = vmatpush.xpose.msra.mxu0 %v243
    %261 = vmatmul.f32.gmra.mxu0 %v241
    %v262 = vpop.f32.mrf.mxu0
    %v263 = vadd.f32 0.0, %v262
    %264 = vdwg.mxu0
    %265 = vrot.lane.b32.xlu0 %v220, 120
    %v266 = vpop.permute.xlu0 %265
    %v267 = vsel %vm240, %v220, 0
    %v269 = vsel %vm240, %v266, 0
    %271 = vmatpush.xpose.msra.mxu0 0.0
    %272 = vmatpush.xpose.msra.mxu0 0.0
    %273 = vmatpush.xpose.msra.mxu0 0.0
    %274 = vmatpush.xpose.msra.mxu0 0.0
    %275 = vmatpush.xpose.msra.mxu0 0.0
    %276 = vmatpush.xpose.msra.mxu0 0.0
    %277 = vmatpush.xpose.msra.mxu0 0.0
    %278 = vmatpush.xpose.msra.mxu0 0.0
    %279 = vmatpush.xpose.msra.mxu0 0.0
    %280 = vmatpush.xpose.msra.mxu0 0.0
    %281 = vmatpush.xpose.msra.mxu0 0.0
    %282 = vmatpush.xpose.msra.mxu0 0.0
    %283 = vmatpush.xpose.msra.mxu0 0.0
    %284 = vmatpush.xpose.msra.mxu0 0.0
    %285 = vmatpush.xpose.msra.mxu0 0.0
    %286 = vmatpush.xpose.msra.mxu0 %v269
    %287 = vmatmul.f32.gmra.mxu0 %v267
    %v288 = vpop.f32.mrf.mxu0
    %v289 = vadd.f32 0.0, %v288
    %290 = vdwg.mxu0
    %291 = vrot.lane.b32.xlu0 %v223, 120
    %v292 = vpop.permute.xlu0 %291
    %v293 = vsel %vm240, %v223, 0
    %v295 = vsel %vm240, %v292, 0
    %297 = vmatpush.xpose.msra.mxu0 0.0
    %298 = vmatpush.xpose.msra.mxu0 0.0
    %299 = vmatpush.xpose.msra.mxu0 0.0
    %300 = vmatpush.xpose.msra.mxu0 0.0
    %301 = vmatpush.xpose.msra.mxu0 0.0
    %302 = vmatpush.xpose.msra.mxu0 0.0
    %303 = vmatpush.xpose.msra.mxu0 0.0
    %304 = vmatpush.xpose.msra.mxu0 0.0
    %305 = vmatpush.xpose.msra.mxu0 0.0
    %306 = vmatpush.xpose.msra.mxu0 0.0
    %307 = vmatpush.xpose.msra.mxu0 0.0
    %308 = vmatpush.xpose.msra.mxu0 0.0
    %309 = vmatpush.xpose.msra.mxu0 0.0
    %310 = vmatpush.xpose.msra.mxu0 0.0
    %311 = vmatpush.xpose.msra.mxu0 0.0
    %312 = vmatpush.xpose.msra.mxu0 %v295
    %313 = vmatmul.f32.gmra.mxu0 %v293
    %v314 = vpop.f32.mrf.mxu0
    %v315 = vadd.f32 0.0, %v314
    %316 = vdwg.mxu0
    %317 = vrot.lane.b32.xlu0 %v226, 120
    %v318 = vpop.permute.xlu0 %317
    %v319 = vsel %vm240, %v226, 0
    %v321 = vsel %vm240, %v318, 0
    %323 = vmatpush.xpose.msra.mxu0 0.0
    %324 = vmatpush.xpose.msra.mxu0 0.0
    %325 = vmatpush.xpose.msra.mxu0 0.0
    %326 = vmatpush.xpose.msra.mxu0 0.0
    %327 = vmatpush.xpose.msra.mxu0 0.0
    %328 = vmatpush.xpose.msra.mxu0 0.0
    %329 = vmatpush.xpose.msra.mxu0 0.0
    %330 = vmatpush.xpose.msra.mxu0 0.0
    %331 = vmatpush.xpose.msra.mxu0 0.0
    %332 = vmatpush.xpose.msra.mxu0 0.0
    %333 = vmatpush.xpose.msra.mxu0 0.0
    %334 = vmatpush.xpose.msra.mxu0 0.0
    %335 = vmatpush.xpose.msra.mxu0 0.0
    %336 = vmatpush.xpose.msra.mxu0 0.0
    %337 = vmatpush.xpose.msra.mxu0 0.0
    %338 = vmatpush.xpose.msra.mxu0 %v321
    %339 = vmatmul.f32.gmra.mxu0 %v319
    %v340 = vpop.f32.mrf.mxu0
    %v341 = vadd.f32 0.0, %v340
    %342 = vdwg.mxu0
    %343 = vrot.lane.b32.xlu0 %v216, 120
    %v344 = vpop.permute.xlu0 %343
    %v345 = vsel %vm240, %v216, 0
    %v347 = vsel %vm240, %v344, 0
    %349 = vmatpush.xpose.msra.mxu0 0.0
    %350 = vmatpush.xpose.msra.mxu0 0.0
    %351 = vmatpush.xpose.msra.mxu0 0.0
    %352 = vmatpush.xpose.msra.mxu0 0.0
    %353 = vmatpush.xpose.msra.mxu0 0.0
    %354 = vmatpush.xpose.msra.mxu0 0.0
    %355 = vmatpush.xpose.msra.mxu0 0.0
    %356 = vmatpush.xpose.msra.mxu0 0.0
    %357 = vmatpush.xpose.msra.mxu0 0.0
    %358 = vmatpush.xpose.msra.mxu0 0.0
    %359 = vmatpush.xpose.msra.mxu0 0.0
    %360 = vmatpush.xpose.msra.mxu0 0.0
    %361 = vmatpush.xpose.msra.mxu0 0.0
    %362 = vmatpush.xpose.msra.mxu0 0.0
    %363 = vmatpush.xpose.msra.mxu0 0.0
    %364 = vmatpush.xpose.msra.mxu0 %v347
    %365 = vmatmul.f32.gmra.mxu0 %v345
    %v366 = vpop.f32.mrf.mxu0
    %v367 = vadd.f32 0.0, %v366
    %368 = vdwg.mxu0
    %369 = vrot.lane.b32.xlu0 %v230, 120
    %v370 = vpop.permute.xlu0 %369
    %v371 = vsel %vm240, %v230, 0
    %v373 = vsel %vm240, %v370, 0
    %375 = vmatpush.xpose.msra.mxu0 0.0
    %376 = vmatpush.xpose.msra.mxu0 0.0
    %377 = vmatpush.xpose.msra.mxu0 0.0
    %378 = vmatpush.xpose.msra.mxu0 0.0
    %379 = vmatpush.xpose.msra.mxu0 0.0
    %380 = vmatpush.xpose.msra.mxu0 0.0
    %381 = vmatpush.xpose.msra.mxu0 0.0
    %382 = vmatpush.xpose.msra.mxu0 0.0
    %383 = vmatpush.xpose.msra.mxu0 0.0
    %384 = vmatpush.xpose.msra.mxu0 0.0
    %385 = vmatpush.xpose.msra.mxu0 0.0
    %386 = vmatpush.xpose.msra.mxu0 0.0
    %387 = vmatpush.xpose.msra.mxu0 0.0
    %388 = vmatpush.xpose.msra.mxu0 0.0
    %389 = vmatpush.xpose.msra.mxu0 0.0
    %390 = vmatpush.xpose.msra.mxu0 %v373
    %391 = vmatmul.f32.gmra.mxu0 %v371
    %v392 = vpop.f32.mrf.mxu0
    %v393 = vadd.f32 0.0, %v392
    %394 = vdwg.mxu0
    %395 = vrot.lane.b32.xlu0 %v233, 120
    %v396 = vpop.permute.xlu0 %395
    %v397 = vsel %vm240, %v233, 0
    %v399 = vsel %vm240, %v396, 0
    %401 = vmatpush.xpose.msra.mxu0 0.0
    %402 = vmatpush.xpose.msra.mxu0 0.0
    %403 = vmatpush.xpose.msra.mxu0 0.0
    %404 = vmatpush.xpose.msra.mxu0 0.0
    %405 = vmatpush.xpose.msra.mxu0 0.0
    %406 = vmatpush.xpose.msra.mxu0 0.0
    %407 = vmatpush.xpose.msra.mxu0 0.0
    %408 = vmatpush.xpose.msra.mxu0 0.0
    %409 = vmatpush.xpose.msra.mxu0 0.0
    %410 = vmatpush.xpose.msra.mxu0 0.0
    %411 = vmatpush.xpose.msra.mxu0 0.0
    %412 = vmatpush.xpose.msra.mxu0 0.0
    %413 = vmatpush.xpose.msra.mxu0 0.0
    %414 = vmatpush.xpose.msra.mxu0 0.0
    %415 = vmatpush.xpose.msra.mxu0 0.0
    %416 = vmatpush.xpose.msra.mxu0 %v399
    %417 = vmatmul.f32.gmra.mxu0 %v397
    %v418 = vpop.f32.mrf.mxu0
    %v419 = vadd.f32 0.0, %v418
    %420 = vdwg.mxu0
    %421 = vrot.lane.b32.xlu0 %v236, 120
    %v422 = vpop.permute.xlu0 %421
    %v423 = vsel %vm240, %v236, 0
    %v425 = vsel %vm240, %v422, 0
    %427 = vmatpush.xpose.msra.mxu0 0.0
    %428 = vmatpush.xpose.msra.mxu0 0.0
    %429 = vmatpush.xpose.msra.mxu0 0.0
    %430 = vmatpush.xpose.msra.mxu0 0.0
    %431 = vmatpush.xpose.msra.mxu0 0.0
    %432 = vmatpush.xpose.msra.mxu0 0.0
    %433 = vmatpush.xpose.msra.mxu0 0.0
    %434 = vmatpush.xpose.msra.mxu0 0.0
    %435 = vmatpush.xpose.msra.mxu0 0.0
    %436 = vmatpush.xpose.msra.mxu0 0.0
    %437 = vmatpush.xpose.msra.mxu0 0.0
    %438 = vmatpush.xpose.msra.mxu0 0.0
    %439 = vmatpush.xpose.msra.mxu0 0.0
    %440 = vmatpush.xpose.msra.mxu0 0.0
    %441 = vmatpush.xpose.msra.mxu0 0.0
    %442 = vmatpush.xpose.msra.mxu0 %v425
    %443 = vmatmul.f32.gmra.mxu0 %v423
    %v444 = vpop.f32.mrf.mxu0
    %v445 = vadd.f32 0.0, %v444
    %446 = vdwg.mxu0
    %v447 = vld [vmem:[#allocation7] sm:$0x1]
    %v448 = vld [vmem:[#allocation7 + $0x1] sm:$0x1]
    %v449 = vld [vmem:[#allocation7 + $0x2] sm:$0x1]
    %v450 = vld [vmem:[#allocation7 + $0x3] sm:$0x1]
    %v451 = vld [vmem:[#allocation7 + $0x4] sm:$0x1]
    %v452 = vld [vmem:[#allocation7 + $0x5] sm:$0x1]
    %v453 = vld [vmem:[#allocation7 + $0x6] sm:$0x1]
    %v454 = vld [vmem:[#allocation7 + $0x7] sm:$0x1]
    %v463 = vperm.slane %v447, 0
    %v464 = vperm.slane %v448, 0
    %v465 = vperm.slane %v449, 0
    %v466 = vperm.slane %v450, 0
    %v467 = vperm.slane %v451, 0
    %v468 = vperm.slane %v452, 0
    %v469 = vperm.slane %v453, 0
    %v470 = vperm.slane %v454, 0
    %v479 = vmul.f32 %v213, %v463
    %v480 = vmul.f32 %v220, %v464
    %v481 = vmul.f32 %v223, %v465
    %v482 = vmul.f32 %v226, %v466
    %v483 = vmul.f32 %v216, %v467
    %v484 = vmul.f32 %v230, %v468
    %v485 = vmul.f32 %v233, %v469
    %v486 = vmul.f32 %v236, %v470
    %v487 = vsel %vm240, %v479, 0.0
    %488 = vadd.xlane.f32.xlu0 %v487
    %v489 = vpop.xlane.xlu0 %488
    %v490 = vsel %vm240, %v480, 0.0
    %491 = vadd.xlane.f32.xlu0 %v490
    %v492 = vpop.xlane.xlu0 %491
    %v493 = vsel %vm240, %v481, 0.0
    %494 = vadd.xlane.f32.xlu0 %v493
    %v495 = vpop.xlane.xlu0 %494
    %v496 = vsel %vm240, %v482, 0.0
    %497 = vadd.xlane.f32.xlu0 %v496
    %v498 = vpop.xlane.xlu0 %497
    %v499 = vsel %vm240, %v483, 0.0
    %500 = vadd.xlane.f32.xlu0 %v499
    %v501 = vpop.xlane.xlu0 %500
    %v502 = vsel %vm240, %v484, 0.0
    %503 = vadd.xlane.f32.xlu0 %v502
    %v504 = vpop.xlane.xlu0 %503
    %v505 = vsel %vm240, %v485, 0.0
    %506 = vadd.xlane.f32.xlu0 %v505
    %v507 = vpop.xlane.xlu0 %506
    %v508 = vsel %vm240, %v486, 0.0
    %509 = vadd.xlane.f32.xlu0 %v508
    %v510 = vpop.xlane.xlu0 %509
    %v511 = vsel %vm240, %v263, -inf
    %512 = vmax.xlane.f32.xlu0 %v511
    %v513 = vpop.xlane.xlu0 %512
    %v514 = vsel %vm240, %v289, -inf
    %515 = vmax.xlane.f32.xlu0 %v514
    %v516 = vpop.xlane.xlu0 %515
    %v517 = vsel %vm240, %v315, -inf
    %518 = vmax.xlane.f32.xlu0 %v517
    %v519 = vpop.xlane.xlu0 %518
    %v520 = vsel %vm240, %v341, -inf
    %521 = vmax.xlane.f32.xlu0 %v520
    %v522 = vpop.xlane.xlu0 %521
    %v523 = vsel %vm240, %v367, -inf
    %524 = vmax.xlane.f32.xlu0 %v523
    %v525 = vpop.xlane.xlu0 %524
    %v526 = vsel %vm240, %v393, -inf
    %527 = vmax.xlane.f32.xlu0 %v526
    %v528 = vpop.xlane.xlu0 %527
    %v529 = vsel %vm240, %v419, -inf
    %530 = vmax.xlane.f32.xlu0 %v529
    %v531 = vpop.xlane.xlu0 %530
    %v532 = vsel %vm240, %v445, -inf
    %533 = vmax.xlane.f32.xlu0 %v532
    %v534 = vpop.xlane.xlu0 %533
    %v535 = vmax.f32 %v513, %v489
    %v536 = vmax.f32 %v516, %v492
    %v537 = vmax.f32 %v519, %v495
    %v538 = vmax.f32 %v522, %v498
    %v539 = vmax.f32 %v525, %v501
    %v540 = vmax.f32 %v528, %v504
    %v541 = vmax.f32 %v531, %v507
    %v542 = vmax.f32 %v534, %v510
    %v543 = vsub.f32 %v263, %v535
    %v544 = vsub.f32 %v289, %v536
    %v545 = vsub.f32 %v315, %v537
    %v546 = vsub.f32 %v341, %v538
    %v547 = vsub.f32 %v367, %v539
    %v548 = vsub.f32 %v393, %v540
    %v549 = vsub.f32 %v419, %v541
    %v550 = vsub.f32 %v445, %v542
    %v551 = vmul.f32 %v543, 1.442695
    %v552 = vpow.pop %v551
    %v553 = vmul.f32 %v544, 1.442695
    %v554 = vpow.pop %v553
    %v555 = vmul.f32 %v545, 1.442695
    %v556 = vpow.pop %v555
    %v557 = vmul.f32 %v546, 1.442695
    %v558 = vpow.pop %v557
    %v559 = vmul.f32 %v547, 1.442695
    %v560 = vpow.pop %v559
    %v561 = vmul.f32 %v548, 1.442695
    %v562 = vpow.pop %v561
    %v563 = vmul.f32 %v549, 1.442695
    %v564 = vpow.pop %v563
    %v565 = vmul.f32 %v550, 1.442695
    %v566 = vpow.pop %v565
    %v567 = vsub.f32 %v489, %v535
    %v568 = vsub.f32 %v492, %v536
    %v569 = vsub.f32 %v495, %v537
    %v570 = vsub.f32 %v498, %v538
    %v571 = vsub.f32 %v501, %v539
    %v572 = vsub.f32 %v504, %v540
    %v573 = vsub.f32 %v507, %v541
    %v574 = vsub.f32 %v510, %v542
    %v575 = vmul.f32 %v567, 1.442695
    %v576 = vpow.pop %v575
    %v577 = vmul.f32 %v568, 1.442695
    %v578 = vpow.pop %v577
    %v579 = vmul.f32 %v569, 1.442695
    %v580 = vpow.pop %v579
    %v581 = vmul.f32 %v570, 1.442695
    %v582 = vpow.pop %v581
    %v583 = vmul.f32 %v571, 1.442695
    %v584 = vpow.pop %v583
    %v585 = vmul.f32 %v572, 1.442695
    %v586 = vpow.pop %v585
    %v587 = vmul.f32 %v573, 1.442695
    %v588 = vpow.pop %v587
    %v589 = vmul.f32 %v574, 1.442695
    %v590 = vpow.pop %v589
    %v591 = vsel %vm240, %v552, 0.0
    %592 = vadd.xlane.f32.xlu0 %v591
    %v593 = vpop.xlane.xlu0 %592
    %v594 = vsel %vm240, %v554, 0.0
    %595 = vadd.xlane.f32.xlu0 %v594
    %v596 = vpop.xlane.xlu0 %595
    %v597 = vsel %vm240, %v556, 0.0
    %598 = vadd.xlane.f32.xlu0 %v597
    %v599 = vpop.xlane.xlu0 %598
    %v600 = vsel %vm240, %v558, 0.0
    %601 = vadd.xlane.f32.xlu0 %v600
    %v602 = vpop.xlane.xlu0 %601
    %v603 = vsel %vm240, %v560, 0.0
    %604 = vadd.xlane.f32.xlu0 %v603
    %v605 = vpop.xlane.xlu0 %604
    %v606 = vsel %vm240, %v562, 0.0
    %607 = vadd.xlane.f32.xlu0 %v606
    %v608 = vpop.xlane.xlu0 %607
    %v609 = vsel %vm240, %v564, 0.0
    %610 = vadd.xlane.f32.xlu0 %v609
    %v611 = vpop.xlane.xlu0 %610
    %v612 = vsel %vm240, %v566, 0.0
    %613 = vadd.xlane.f32.xlu0 %v612
    %v614 = vpop.xlane.xlu0 %613
    %v615 = vadd.f32 %v593, %v576
    %v616 = vadd.f32 %v596, %v578
    %v617 = vadd.f32 %v599, %v580
    %v618 = vadd.f32 %v602, %v582
    %v619 = vadd.f32 %v605, %v584
    %v620 = vadd.f32 %v608, %v586
    %v621 = vadd.f32 %v611, %v588
    %v622 = vadd.f32 %v614, %v590
    %v623 = vrcp.pop %v615
    %v624 = vmul.f32 %v615, %v623
    %v625 = vsub.f32 1.0, %v624
    %v626 = vmul.f32 %v623, %v625
    %v627 = vadd.f32 %v623, %v626
    %vm628 = vweird.f32 %v615
    %vm629 = vweird.f32 %v623
    %vm630 = vmor %vm628, %vm629
    %v631 = vsel %vm630, %v623, %v627
    %v632 = vand.u32 2147483647, %v615
    %vm633 = vcmp.eq.f32.partialorder %v632, 8.507059e+37
    %v634 = vand.u32 %v615, 2147483648
    %v635 = vor.u32 1.1754944e-38, %v634
    %v636 = vsel %vm633, %v635, %v631
    %v637 = vmul.f32 1.0, %v636
    %v638 = vrcp.pop %v616
    %v639 = vmul.f32 %v616, %v638
    %v640 = vsub.f32 1.0, %v639
    %v641 = vmul.f32 %v638, %v640
    %v642 = vadd.f32 %v638, %v641
    %vm643 = vweird.f32 %v616
    %vm644 = vweird.f32 %v638
    %vm645 = vmor %vm643, %vm644
    %v646 = vsel %vm645, %v638, %v642
    %v647 = vand.u32 2147483647, %v616
    %vm648 = vcmp.eq.f32.partialorder %v647, 8.507059e+37
    %v649 = vand.u32 %v616, 2147483648
    %v650 = vor.u32 1.1754944e-38, %v649
    %v651 = vsel %vm648, %v650, %v646
    %v652 = vmul.f32 1.0, %v651
    %v653 = vrcp.pop %v617
    %v654 = vmul.f32 %v617, %v653
    %v655 = vsub.f32 1.0, %v654
    %v656 = vmul.f32 %v653, %v655
    %v657 = vadd.f32 %v653, %v656
    %vm658 = vweird.f32 %v617
    %vm659 = vweird.f32 %v653
    %vm660 = vmor %vm658, %vm659
    %v661 = vsel %vm660, %v653, %v657
    %v662 = vand.u32 2147483647, %v617
    %vm663 = vcmp.eq.f32.partialorder %v662, 8.507059e+37
    %v664 = vand.u32 %v617, 2147483648
    %v665 = vor.u32 1.1754944e-38, %v664
    %v666 = vsel %vm663, %v665, %v661
    %v667 = vmul.f32 1.0, %v666
    %v668 = vrcp.pop %v618
    %v669 = vmul.f32 %v618, %v668
    %v670 = vsub.f32 1.0, %v669
    %v671 = vmul.f32 %v668, %v670
    %v672 = vadd.f32 %v668, %v671
    %vm673 = vweird.f32 %v618
    %vm674 = vweird.f32 %v668
    %vm675 = vmor %vm673, %vm674
    %v676 = vsel %vm675, %v668, %v672
    %v677 = vand.u32 2147483647, %v618
    %vm678 = vcmp.eq.f32.partialorder %v677, 8.507059e+37
    %v679 = vand.u32 %v618, 2147483648
    %v680 = vor.u32 1.1754944e-38, %v679
    %v681 = vsel %vm678, %v680, %v676
    %v682 = vmul.f32 1.0, %v681
    %v683 = vrcp.pop %v619
    %v684 = vmul.f32 %v619, %v683
    %v685 = vsub.f32 1.0, %v684
    %v686 = vmul.f32 %v683, %v685
    %v687 = vadd.f32 %v683, %v686
    %vm688 = vweird.f32 %v619
    %vm689 = vweird.f32 %v683
    %vm690 = vmor %vm688, %vm689
    %v691 = vsel %vm690, %v683, %v687
    %v692 = vand.u32 2147483647, %v619
    %vm693 = vcmp.eq.f32.partialorder %v692, 8.507059e+37
    %v694 = vand.u32 %v619, 2147483648
    %v695 = vor.u32 1.1754944e-38, %v694
    %v696 = vsel %vm693, %v695, %v691
    %v697 = vmul.f32 1.0, %v696
    %v698 = vrcp.pop %v620
    %v699 = vmul.f32 %v620, %v698
    %v700 = vsub.f32 1.0, %v699
    %v701 = vmul.f32 %v698, %v700
    %v702 = vadd.f32 %v698, %v701
    %vm703 = vweird.f32 %v620
    %vm704 = vweird.f32 %v698
    %vm705 = vmor %vm703, %vm704
    %v706 = vsel %vm705, %v698, %v702
    %v707 = vand.u32 2147483647, %v620
    %vm708 = vcmp.eq.f32.partialorder %v707, 8.507059e+37
    %v709 = vand.u32 %v620, 2147483648
    %v710 = vor.u32 1.1754944e-38, %v709
    %v711 = vsel %vm708, %v710, %v706
    %v712 = vmul.f32 1.0, %v711
    %v713 = vrcp.pop %v621
    %v714 = vmul.f32 %v621, %v713
    %v715 = vsub.f32 1.0, %v714
    %v716 = vmul.f32 %v713, %v715
    %v717 = vadd.f32 %v713, %v716
    %vm718 = vweird.f32 %v621
    %vm719 = vweird.f32 %v713
    %vm720 = vmor %vm718, %vm719
    %v721 = vsel %vm720, %v713, %v717
    %v722 = vand.u32 2147483647, %v621
    %vm723 = vcmp.eq.f32.partialorder %v722, 8.507059e+37
    %v724 = vand.u32 %v621, 2147483648
    %v725 = vor.u32 1.1754944e-38, %v724
    %v726 = vsel %vm723, %v725, %v721
    %v727 = vmul.f32 1.0, %v726
    %v728 = vrcp.pop %v622
    %v729 = vmul.f32 %v622, %v728
    %v730 = vsub.f32 1.0, %v729
    %v731 = vmul.f32 %v728, %v730
    %v732 = vadd.f32 %v728, %v731
    %vm733 = vweird.f32 %v622
    %vm734 = vweird.f32 %v728
    %vm735 = vmor %vm733, %vm734
    %v736 = vsel %vm735, %v728, %v732
    %v737 = vand.u32 2147483647, %v622
    %vm738 = vcmp.eq.f32.partialorder %v737, 8.507059e+37
    %v739 = vand.u32 %v622, 2147483648
    %v740 = vor.u32 1.1754944e-38, %v739
    %v741 = vsel %vm738, %v740, %v736
    %v742 = vmul.f32 1.0, %v741
    %v743 = vmul.f32 %v552, %v637
    %v744 = vmul.f32 %v554, %v652
    %v745 = vmul.f32 %v556, %v667
    %v746 = vmul.f32 %v558, %v682
    %v747 = vmul.f32 %v560, %v697
    %v748 = vmul.f32 %v562, %v712
    %v749 = vmul.f32 %v564, %v727
    %v750 = vmul.f32 %v566, %v742
    %v751 = vmul.f32 %v576, %v637
    %v752 = vmul.f32 %v578, %v652
    %v753 = vmul.f32 %v580, %v667
    %v754 = vmul.f32 %v582, %v682
    %v755 = vmul.f32 %v584, %v697
    %v756 = vmul.f32 %v586, %v712
    %v757 = vmul.f32 %v588, %v727
    %v758 = vmul.f32 %v590, %v742
    %v759 = vld [vmem:[#allocation8] sm:$0x1]
    %v760 = vld [vmem:[#allocation8 + $0x1] sm:$0x1]
    %v761 = vld [vmem:[#allocation8 + $0x2] sm:$0x1]
    %v762 = vld [vmem:[#allocation8 + $0x3] sm:$0x1]
    %v763 = vld [vmem:[#allocation8 + $0x4] sm:$0x1]
    %v764 = vld [vmem:[#allocation8 + $0x5] sm:$0x1]
    %v765 = vld [vmem:[#allocation8 + $0x6] sm:$0x1]
    %v766 = vld [vmem:[#allocation8 + $0x7] sm:$0x1]
    %v775 = vperm.slane %v759, 0
    %v776 = vperm.slane %v760, 0
    %v777 = vperm.slane %v761, 0
    %v778 = vperm.slane %v762, 0
    %v779 = vperm.slane %v763, 0
    %v780 = vperm.slane %v764, 0
    %v781 = vperm.slane %v765, 0
    %v782 = vperm.slane %v766, 0
    %v791 = vmul.f32 %v751, %v775
    %v792 = vmul.f32 %v752, %v776
    %v793 = vmul.f32 %v753, %v777
    %v794 = vmul.f32 %v754, %v778
    %v795 = vmul.f32 %v755, %v779
    %v796 = vmul.f32 %v756, %v780
    %v797 = vmul.f32 %v757, %v781
    %v798 = vmul.f32 %v758, %v782
    %799 = vrot.lane.b32.xlu0 %v213, 112
    %v800 = vpop.permute.xlu0 %799
    %v803 = vsel %vm240, %v743, 0
    %805 = vmatpush.msra.mxu0 0.0
    %806 = vmatpush.msra.mxu0 0.0
    %807 = vmatpush.msra.mxu0 0.0
    %808 = vmatpush.msra.mxu0 0.0
    %809 = vmatpush.msra.mxu0 0.0
    %810 = vmatpush.msra.mxu0 0.0
    %811 = vmatpush.msra.mxu0 0.0
    %812 = vmatpush.msra.mxu0 0.0
    %813 = vmatpush.msra.mxu0 0.0
    %814 = vmatpush.msra.mxu0 0.0
    %815 = vmatpush.msra.mxu0 0.0
    %816 = vmatpush.msra.mxu0 0.0
    %817 = vmatpush.msra.mxu0 0.0
    %818 = vmatpush.msra.mxu0 0.0
    %819 = vmatpush.msra.mxu0 0.0
    %820 = vmatpush.msra.mxu0 %v800
    %821 = vmatmul.f32.gmra.mxu0 %v803
    %v822 = vpop.f32.mrf.mxu0
    %v823 = vadd.f32 %v791, %v822
    %824 = vdwg.mxu0
    %825 = vrot.lane.b32.xlu0 %v220, 112
    %v826 = vpop.permute.xlu0 %825
    %v829 = vsel %vm240, %v744, 0
    %831 = vmatpush.msra.mxu0 0.0
    %832 = vmatpush.msra.mxu0 0.0
    %833 = vmatpush.msra.mxu0 0.0
    %834 = vmatpush.msra.mxu0 0.0
    %835 = vmatpush.msra.mxu0 0.0
    %836 = vmatpush.msra.mxu0 0.0
    %837 = vmatpush.msra.mxu0 0.0
    %838 = vmatpush.msra.mxu0 0.0
    %839 = vmatpush.msra.mxu0 0.0
    %840 = vmatpush.msra.mxu0 0.0
    %841 = vmatpush.msra.mxu0 0.0
    %842 = vmatpush.msra.mxu0 0.0
    %843 = vmatpush.msra.mxu0 0.0
    %844 = vmatpush.msra.mxu0 0.0
    %845 = vmatpush.msra.mxu0 0.0
    %846 = vmatpush.msra.mxu0 %v826
    %847 = vmatmul.f32.gmra.mxu0 %v829
    %v848 = vpop.f32.mrf.mxu0
    %v849 = vadd.f32 %v792, %v848
    %850 = vdwg.mxu0
    %851 = vrot.lane.b32.xlu0 %v223, 112
    %v852 = vpop.permute.xlu0 %851
    %v855 = vsel %vm240, %v745, 0
    %857 = vmatpush.msra.mxu0 0.0
    %858 = vmatpush.msra.mxu0 0.0
    %859 = vmatpush.msra.mxu0 0.0
    %860 = vmatpush.msra.mxu0 0.0
    %861 = vmatpush.msra.mxu0 0.0
    %862 = vmatpush.msra.mxu0 0.0
    %863 = vmatpush.msra.mxu0 0.0
    %864 = vmatpush.msra.mxu0 0.0
    %865 = vmatpush.msra.mxu0 0.0
    %866 = vmatpush.msra.mxu0 0.0
    %867 = vmatpush.msra.mxu0 0.0
    %868 = vmatpush.msra.mxu0 0.0
    %869 = vmatpush.msra.mxu0 0.0
    %870 = vmatpush.msra.mxu0 0.0
    %871 = vmatpush.msra.mxu0 0.0
    %872 = vmatpush.msra.mxu0 %v852
    %873 = vmatmul.f32.gmra.mxu0 %v855
    %v874 = vpop.f32.mrf.mxu0
    %v875 = vadd.f32 %v793, %v874
    %876 = vdwg.mxu0
    %877 = vrot.lane.b32.xlu0 %v226, 112
    %v878 = vpop.permute.xlu0 %877
    %v881 = vsel %vm240, %v746, 0
    %883 = vmatpush.msra.mxu0 0.0
    %884 = vmatpush.msra.mxu0 0.0
    %885 = vmatpush.msra.mxu0 0.0
    %886 = vmatpush.msra.mxu0 0.0
    %887 = vmatpush.msra.mxu0 0.0
    %888 = vmatpush.msra.mxu0 0.0
    %889 = vmatpush.msra.mxu0 0.0
    %890 = vmatpush.msra.mxu0 0.0
    %891 = vmatpush.msra.mxu0 0.0
    %892 = vmatpush.msra.mxu0 0.0
    %893 = vmatpush.msra.mxu0 0.0
    %894 = vmatpush.msra.mxu0 0.0
    %895 = vmatpush.msra.mxu0 0.0
    %896 = vmatpush.msra.mxu0 0.0
    %897 = vmatpush.msra.mxu0 0.0
    %898 = vmatpush.msra.mxu0 %v878
    %899 = vmatmul.f32.gmra.mxu0 %v881
    %v900 = vpop.f32.mrf.mxu0
    %v901 = vadd.f32 %v794, %v900
    %902 = vdwg.mxu0
    %903 = vrot.lane.b32.xlu0 %v216, 112
    %v904 = vpop.permute.xlu0 %903
    %v907 = vsel %vm240, %v747, 0
    %909 = vmatpush.msra.mxu0 0.0
    %910 = vmatpush.msra.mxu0 0.0
    %911 = vmatpush.msra.mxu0 0.0
    %912 = vmatpush.msra.mxu0 0.0
    %913 = vmatpush.msra.mxu0 0.0
    %914 = vmatpush.msra.mxu0 0.0
    %915 = vmatpush.msra.mxu0 0.0
    %916 = vmatpush.msra.mxu0 0.0
    %917 = vmatpush.msra.mxu0 0.0
    %918 = vmatpush.msra.mxu0 0.0
    %919 = vmatpush.msra.mxu0 0.0
    %920 = vmatpush.msra.mxu0 0.0
    %921 = vmatpush.msra.mxu0 0.0
    %922 = vmatpush.msra.mxu0 0.0
    %923 = vmatpush.msra.mxu0 0.0
    %924 = vmatpush.msra.mxu0 %v904
    %925 = vmatmul.f32.gmra.mxu0 %v907
    %v926 = vpop.f32.mrf.mxu0
    %v927 = vadd.f32 %v795, %v926
    %928 = vdwg.mxu0
    %929 = vrot.lane.b32.xlu0 %v230, 112
    %v930 = vpop.permute.xlu0 %929
    %v933 = vsel %vm240, %v748, 0
    %935 = vmatpush.msra.mxu0 0.0
    %936 = vmatpush.msra.mxu0 0.0
    %937 = vmatpush.msra.mxu0 0.0
    %938 = vmatpush.msra.mxu0 0.0
    %939 = vmatpush.msra.mxu0 0.0
    %940 = vmatpush.msra.mxu0 0.0
    %941 = vmatpush.msra.mxu0 0.0
    %942 = vmatpush.msra.mxu0 0.0
    %943 = vmatpush.msra.mxu0 0.0
    %944 = vmatpush.msra.mxu0 0.0
    %945 = vmatpush.msra.mxu0 0.0
    %946 = vmatpush.msra.mxu0 0.0
    %947 = vmatpush.msra.mxu0 0.0
    %948 = vmatpush.msra.mxu0 0.0
    %949 = vmatpush.msra.mxu0 0.0
    %950 = vmatpush.msra.mxu0 %v930
    %951 = vmatmul.f32.gmra.mxu0 %v933
    %v952 = vpop.f32.mrf.mxu0
    %v953 = vadd.f32 %v796, %v952
    %954 = vdwg.mxu0
    %955 = vrot.lane.b32.xlu0 %v233, 112
    %v956 = vpop.permute.xlu0 %955
    %v959 = vsel %vm240, %v749, 0
    %961 = vmatpush.msra.mxu0 0.0
    %962 = vmatpush.msra.mxu0 0.0
    %963 = vmatpush.msra.mxu0 0.0
    %964 = vmatpush.msra.mxu0 0.0
    %965 = vmatpush.msra.mxu0 0.0
    %966 = vmatpush.msra.mxu0 0.0
    %967 = vmatpush.msra.mxu0 0.0
    %968 = vmatpush.msra.mxu0 0.0
    %969 = vmatpush.msra.mxu0 0.0
    %970 = vmatpush.msra.mxu0 0.0
    %971 = vmatpush.msra.mxu0 0.0
    %972 = vmatpush.msra.mxu0 0.0
    %973 = vmatpush.msra.mxu0 0.0
    %974 = vmatpush.msra.mxu0 0.0
    %975 = vmatpush.msra.mxu0 0.0
    %976 = vmatpush.msra.mxu0 %v956
    %977 = vmatmul.f32.gmra.mxu0 %v959
    %v978 = vpop.f32.mrf.mxu0
    %v979 = vadd.f32 %v797, %v978
    %980 = vdwg.mxu0
    %981 = vrot.lane.b32.xlu0 %v236, 112
    %v982 = vpop.permute.xlu0 %981
    %v985 = vsel %vm240, %v750, 0
    %987 = vmatpush.msra.mxu0 0.0
    %988 = vmatpush.msra.mxu0 0.0
    %989 = vmatpush.msra.mxu0 0.0
    %990 = vmatpush.msra.mxu0 0.0
    %991 = vmatpush.msra.mxu0 0.0
    %992 = vmatpush.msra.mxu0 0.0
    %993 = vmatpush.msra.mxu0 0.0
    %994 = vmatpush.msra.mxu0 0.0
    %995 = vmatpush.msra.mxu0 0.0
    %996 = vmatpush.msra.mxu0 0.0
    %997 = vmatpush.msra.mxu0 0.0
    %998 = vmatpush.msra.mxu0 0.0
    %999 = vmatpush.msra.mxu0 0.0
    %1000 = vmatpush.msra.mxu0 0.0
    %1001 = vmatpush.msra.mxu0 0.0
    %1002 = vmatpush.msra.mxu0 %v982
    %1003 = vmatmul.f32.gmra.mxu0 %v985
    %v1004 = vpop.f32.mrf.mxu0
    %v1005 = vadd.f32 %v798, %v1004
    %1006 = vdwg.mxu0
    %1008 = vrot.lane.b32.xlu0 %v849, 8
    %v1009 = vpop.permute.xlu0 %1008
    %1012 = vrot.lane.b32.xlu0 %v875, 16
    %v1013 = vpop.permute.xlu0 %1012
    %1016 = vrot.lane.b32.xlu0 %v901, 24
    %v1017 = vpop.permute.xlu0 %1016
    %v1019 = vsel %vm240, %v823, %v1009
    %vm1020 = vcmask 130048
    %v1021 = vsel %vm1020, %v1019, %v1013
    %vm1022 = vcmask 195584
    %v1023 = vsel %vm1022, %v1021, %v1017
    %1025 = vrot.lane.b32.xlu0 %v953, 8
    %v1026 = vpop.permute.xlu0 %1025
    %1029 = vrot.lane.b32.xlu0 %v979, 16
    %v1030 = vpop.permute.xlu0 %1029
    %1033 = vrot.lane.b32.xlu0 %v1005, 24
    %v1034 = vpop.permute.xlu0 %1033
    %v1036 = vsel %vm240, %v927, %v1026
    %v1037 = vsel %vm1020, %v1036, %v1030
    %v1038 = vsel %vm1022, %v1037, %v1034
    %v1039 = vld [vmem:[%s7] sm:$0xff]
    %v1040 = vld [vmem:[%s7 + $0x8] sm:$0xff]
    %v1041 = vld [vmem:[%s7 + $0x10] sm:$0xff]
    %v1042 = vld [vmem:[%s7 + $0x18] sm:$0xff]
    %v1043 = vld [vmem:[%s8] sm:$0x1]
    %v1045 = vperm.slane %v1043, 0
    %v1048 = vsel %vm119, %v1023, 0
    %v1051 = vsel %vm119, %v1038, 0
    %1053 = vmatpush.msra.mxu0 0.0
    %1054 = vmatpush.msra.mxu0 0.0
    %1055 = vmatpush.msra.mxu0 0.0
    %1056 = vmatpush.msra.mxu0 0.0
    %1057 = vmatpush.msra.mxu0 0.0
    %1058 = vmatpush.msra.mxu0 0.0
    %1059 = vmatpush.msra.mxu0 0.0
    %1060 = vmatpush.msra.mxu0 0.0
    %1061 = vmatpush.msra.mxu0 0.0
    %1062 = vmatpush.msra.mxu0 0.0
    %1063 = vmatpush.msra.mxu0 0.0
    %1064 = vmatpush.msra.mxu0 0.0
    %1065 = vmatpush.msra.mxu0 %v1042
    %1066 = vmatpush.msra.mxu0 %v1041
    %1067 = vmatpush.msra.mxu0 %v1040
    %1068 = vmatpush.msra.mxu0 %v1039
    %1069 = vmatmul.f32.gmra.mxu0 %v1048
    %v1070 = vpop.f32.mrf.mxu0
    %v1071 = vadd.f32 %v1045, %v1070
    %1072 = vmatmul.f32.gmra.mxu0 %v1051
    %v1073 = vpop.f32.mrf.mxu0
    %v1074 = vadd.f32 %v1045, %v1073
    %1075 = vdwg.mxu0
    %v1076 = vadd.f32 %v115, %v1071
    %v1077 = vadd.f32 %v116, %v1074
    %v1078 = vsel %vm240, %v743, 0.0
    %v1079 = vsel %vm240, %v744, 0.0
    %v1080 = vadd.f32 %v1078, %v1079
    %v1081 = vsel %vm240, %v745, 0.0
    %v1082 = vadd.f32 %v1080, %v1081
    %v1083 = vsel %vm240, %v746, 0.0
    %v1084 = vadd.f32 %v1082, %v1083
    %v1085 = vsel %vm240, %v747, 0.0
    %v1086 = vsel %vm240, %v748, 0.0
    %v1087 = vadd.f32 %v1085, %v1086
    %v1088 = vsel %vm240, %v749, 0.0
    %v1089 = vadd.f32 %v1087, %v1088
    %v1090 = vsel %vm240, %v750, 0.0
    %v1091 = vadd.f32 %v1089, %v1090
    %v1092 = vrcp.pop 4.0
    %v1093 = vmul.f32 4.0, %v1092
    %v1094 = vsub.f32 1.0, %v1093
    %v1095 = vmul.f32 %v1092, %v1094
    %v1096 = vadd.f32 %v1092, %v1095
    %vm1097 = vweird.f32 %v1092
    %v1098 = vsel %vm1097, %v1092, %v1096
    %v1099 = vmul.f32 %v1084, %v1098
    %v1100 = vmul.f32 %v1091, %v1098
    %v1101 = vadd.f32 %v751, %v752
    %v1102 = vadd.f32 %v1101, %v753
    %v1103 = vadd.f32 %v1102, %v754
    %v1104 = vadd.f32 %v755, %v756
    %v1105 = vadd.f32 %v1104, %v757
    %v1106 = vadd.f32 %v1105, %v758
    %v1107 = vmul.f32 %v1103, %v1098
    %v1108 = vmul.f32 %v1106, %v1098
    %v1109 = vsel %vm240, %v1099, %v1107
    %v1110 = vsel %vm240, %v1100, %v1108
    %vm1111 = vcmask 72704
    %v1112 = vsel %vm1111, %v1109, 0.0
    %v1113 = vsel %vm1111, %v1110, 0.0
    %1114 = vst [vmem:[#allocation11] sm:$0xff] %v1112
    %1115 = vst [vmem:[#allocation11 + $0x8] sm:$0xff] %v1113
    %v1116 = vld [vmem:[%s9] sm:$0x1]
    %v1117 = vld [vmem:[%s10] sm:$0x1]
    %v1118 = vsel %vm119, %v1076, 0.0
    %1119 = vadd.xlane.f32.xlu0 %v1118
    %v1120 = vpop.xlane.xlu0 %1119
    %v1121 = vsel %vm119, %v1077, 0.0
    %1122 = vadd.xlane.f32.xlu0 %v1121
    %v1123 = vpop.xlane.xlu0 %1122
    %v1124 = vmul.f32 %v1120, %v132
    %v1125 = vmul.f32 %v1123, %v132
    %v1126 = vsub.f32 %v1076, %v1124
    %v1127 = vsub.f32 %v1077, %v1125
    %v1128 = vmul.f32 %v1126, %v1126
    %v1129 = vmul.f32 %v1127, %v1127
    %v1130 = vsel %vm119, %v1128, 0.0
    %1131 = vadd.xlane.f32.xlu0 %v1130
    %v1132 = vpop.xlane.xlu0 %1131
    %v1133 = vsel %vm119, %v1129, 0.0
    %1134 = vadd.xlane.f32.xlu0 %v1133
    %v1135 = vpop.xlane.xlu0 %1134
    %v1136 = vmul.f32 %v1132, %v132
    %v1137 = vmul.f32 %v1135, %v132
    %v1138 = vadd.f32 %v1136, 1e-12
    %v1139 = vadd.f32 %v1137, 1e-12
    %v1140 = vrsqrt.pop %v1138
    %v1141 = vmul.f32 %v1140, %v1138
    %v1142 = vmul.f32 %v1141, %v1140
    %v1143 = vmul.f32 0.5, %v1142
    %v1144 = vsub.f32 1.5, %v1143
    %v1145 = vmul.f32 %v1140, %v1144
    %vm1146 = vweird.f32 %v1138
    %vm1147 = vweird.f32 %v1140
    %vm1148 = vmor %vm1146, %vm1147
    %v1149 = vsel %vm1148, %v1140, %v1145
    %v1150 = vrsqrt.pop %v1139
    %v1151 = vmul.f32 %v1150, %v1139
    %v1152 = vmul.f32 %v1151, %v1150
    %v1153 = vmul.f32 0.5, %v1152
    %v1154 = vsub.f32 1.5, %v1153
    %v1155 = vmul.f32 %v1150, %v1154
    %vm1156 = vweird.f32 %v1139
    %vm1157 = vweird.f32 %v1150
    %vm1158 = vmor %vm1156, %vm1157
    %v1159 = vsel %vm1158, %v1150, %v1155
    %v1160 = vmul.f32 %v1126, %v1149
    %v1161 = vmul.f32 %v1127, %v1159
    %v1163 = vperm.slane %v1116, 0
    %v1165 = vmul.f32 %v1163, %v1160
    %v1166 = vmul.f32 %v1163, %v1161
    %v1168 = vperm.slane %v1117, 0
    %v1170 = vadd.f32 %v1165, %v1168
    %v1171 = vadd.f32 %v1166, %v1168
    %v1172 = vld [vmem:[%s11] sm:$0xff]
    %v1173 = vld [vmem:[%s11 + $0x8] sm:$0xff]
    %v1174 = vld [vmem:[%s11 + $0x10] sm:$0xff]
    %v1175 = vld [vmem:[%s11 + $0x18] sm:$0xff]
    %v1176 = vld [vmem:[%s12] sm:$0x1]
    %v1178 = vperm.slane %v1176, 0
    %v1181 = vsel %vm119, %v1170, 0
    %v1184 = vsel %vm119, %v1171, 0
    %1186 = vmatpush.msra.mxu0 0.0
    %1187 = vmatpush.msra.mxu0 0.0
    %1188 = vmatpush.msra.mxu0 0.0
    %1189 = vmatpush.msra.mxu0 0.0
    %1190 = vmatpush.msra.mxu0 0.0
    %1191 = vmatpush.msra.mxu0 0.0
    %1192 = vmatpush.msra.mxu0 0.0
    %1193 = vmatpush.msra.mxu0 0.0
    %1194 = vmatpush.msra.mxu0 0.0
    %1195 = vmatpush.msra.mxu0 0.0
    %1196 = vmatpush.msra.mxu0 0.0
    %1197 = vmatpush.msra.mxu0 0.0
    %1198 = vmatpush.msra.mxu0 %v1175
    %1199 = vmatpush.msra.mxu0 %v1174
    %1200 = vmatpush.msra.mxu0 %v1173
    %1201 = vmatpush.msra.mxu0 %v1172
    %1202 = vmatmul.f32.gmra.mxu0 %v1181
    %v1203 = vpop.f32.mrf.mxu0
    %v1204 = vadd.f32 %v1178, %v1203
    %1205 = vmatmul.f32.gmra.mxu0 %v1184
    %v1206 = vpop.f32.mrf.mxu0
    %v1207 = vadd.f32 %v1178, %v1206
    %1208 = vdwg.mxu0
    %v1209 = vmul.f32 %v1204, 0.5
    %v1210 = vmul.f32 %v1207, 0.5
    %v1211 = vmul.f32 %v1204, 0.70710677
    %v1212 = vmul.f32 %v1207, 0.70710677
    %v1213 = vand.u32 2147483647, %v1211
    %v1214 = vand.u32 2147483647, %v1212
    %v1215 = vmul.f32 %v1213, 0.3275911
    %v1216 = vmul.f32 %v1214, 0.3275911
    %v1217 = vadd.f32 %v1215, 1.0
    %v1218 = vadd.f32 %v1216, 1.0
    %v1219 = vrcp.pop %v1217
    %v1220 = vmul.f32 %v1217, %v1219
    %v1221 = vsub.f32 1.0, %v1220
    %v1222 = vmul.f32 %v1219, %v1221
    %v1223 = vadd.f32 %v1219, %v1222
    %vm1224 = vweird.f32 %v1217
    %vm1225 = vweird.f32 %v1219
    %vm1226 = vmor %vm1224, %vm1225
    %v1227 = vsel %vm1226, %v1219, %v1223
    %v1228 = vand.u32 2147483647, %v1217
    %vm1229 = vcmp.eq.f32.partialorder %v1228, 8.507059e+37
    %v1230 = vand.u32 %v1217, 2147483648
    %v1231 = vor.u32 1.1754944e-38, %v1230
    %v1232 = vsel %vm1229, %v1231, %v1227
    %v1233 = vmul.f32 1.0, %v1232
    %v1234 = vrcp.pop %v1218
    %v1235 = vmul.f32 %v1218, %v1234
    %v1236 = vsub.f32 1.0, %v1235
    %v1237 = vmul.f32 %v1234, %v1236
    %v1238 = vadd.f32 %v1234, %v1237
    %vm1239 = vweird.f32 %v1218
    %vm1240 = vweird.f32 %v1234
    %vm1241 = vmor %vm1239, %vm1240
    %v1242 = vsel %vm1241, %v1234, %v1238
    %v1243 = vand.u32 2147483647, %v1218
    %vm1244 = vcmp.eq.f32.partialorder %v1243, 8.507059e+37
    %v1245 = vand.u32 %v1218, 2147483648
    %v1246 = vor.u32 1.1754944e-38, %v1245
    %v1247 = vsel %vm1244, %v1246, %v1242
    %v1248 = vmul.f32 1.0, %v1247
    %v1249 = vmul.f32 %v1233, 1.0614054
    %v1250 = vmul.f32 %v1248, 1.0614054
    %v1251 = vadd.f32 %v1249, -1.4531521
    %v1252 = vadd.f32 %v1250, -1.4531521
    %v1253 = vmul.f32 %v1251, %v1233
    %v1254 = vmul.f32 %v1252, %v1248
    %v1255 = vadd.f32 %v1253, 1.4214138
    %v1256 = vadd.f32 %v1254, 1.4214138
    %v1257 = vmul.f32 %v1255, %v1233
    %v1258 = vmul.f32 %v1256, %v1248
    %v1259 = vadd.f32 %v1257, -0.28449672
    %v1260 = vadd.f32 %v1258, -0.28449672
    %v1261 = vmul.f32 %v1259, %v1233
    %v1262 = vmul.f32 %v1260, %v1248
    %v1263 = vadd.f32 %v1261, 0.2548296
    %v1264 = vadd.f32 %v1262, 0.2548296
    %v1265 = vmul.f32 %v1263, %v1233
    %v1266 = vmul.f32 %v1264, %v1248
    %v1267 = vsub.f32 0.0, %v1213
    %v1268 = vsub.f32 0.0, %v1214
    %v1269 = vmul.f32 %v1267, %v1213
    %v1270 = vmul.f32 %v1268, %v1214
    %v1271 = vmul.f32 %v1269, 1.442695
    %v1272 = vpow.pop %v1271
    %v1273 = vmul.f32 %v1270, 1.442695
    %v1274 = vpow.pop %v1273
    %v1275 = vmul.f32 %v1265, %v1272
    %v1276 = vmul.f32 %v1266, %v1274
    %v1277 = vsub.f32 1.0, %v1275
    %v1278 = vsub.f32 1.0, %v1276
    %vm1279 = vcmp.lt.f32.partialorder %v1211, 0.0
    %vm1280 = vcmp.lt.f32.partialorder %v1212, 0.0
    %v1281 = vsub.f32 0.0, %v1277
    %v1282 = vsub.f32 0.0, %v1278
    %v1283 = vsel %vm1279, %v1281, %v1277
    %v1284 = vsel %vm1280, %v1282, %v1278
    %v1285 = vadd.f32 %v1283, 1.0
    %v1286 = vadd.f32 %v1284, 1.0
    %v1287 = vmul.f32 %v1209, %v1285
    %v1288 = vmul.f32 %v1210, %v1286
    %v1289 = vld [vmem:[%s13] sm:$0xff]
    %v1290 = vld [vmem:[%s13 + $0x8] sm:$0xff]
    %v1291 = vld [vmem:[%s13 + $0x10] sm:$0xff]
    %v1292 = vld [vmem:[%s13 + $0x18] sm:$0xff]
    %v1293 = vld [vmem:[%s13 + $0x20] sm:$0xff]
    %v1294 = vld [vmem:[%s13 + $0x28] sm:$0xff]
    %v1295 = vld [vmem:[%s13 + $0x30] sm:$0xff]
    %v1296 = vld [vmem:[%s13 + $0x38] sm:$0xff]
    %v1297 = vld [vmem:[%s14] sm:$0x1]
    %v1299 = vperm.slane %v1297, 0
    %vm1301 = vcmask 523264
    %v1303 = vsel %vm1301, %v1287, 0
    %v1306 = vsel %vm1301, %v1288, 0
    %1308 = vmatpush.msra.mxu0 0.0
    %1309 = vmatpush.msra.mxu0 0.0
    %1310 = vmatpush.msra.mxu0 0.0
    %1311 = vmatpush.msra.mxu0 0.0
    %1312 = vmatpush.msra.mxu0 0.0
    %1313 = vmatpush.msra.mxu0 0.0
    %1314 = vmatpush.msra.mxu0 0.0
    %1315 = vmatpush.msra.mxu0 0.0
    %1316 = vmatpush.msra.mxu0 %v1296
    %1317 = vmatpush.msra.mxu0 %v1295
    %1318 = vmatpush.msra.mxu0 %v1294
    %1319 = vmatpush.msra.mxu0 %v1293
    %1320 = vmatpush.msra.mxu0 %v1292
    %1321 = vmatpush.msra.mxu0 %v1291
    %1322 = vmatpush.msra.mxu0 %v1290
    %1323 = vmatpush.msra.mxu0 %v1289
    %1324 = vmatmul.f32.gmra.mxu0 %v1303
    %v1325 = vpop.f32.mrf.mxu0
    %v1326 = vadd.f32 %v1299, %v1325
    %1327 = vmatmul.f32.gmra.mxu0 %v1306
    %v1328 = vpop.f32.mrf.mxu0
    %v1329 = vadd.f32 %v1299, %v1328
    %1330 = vdwg.mxu0
    %v1331 = vadd.f32 %v1076, %v1326
    %v1332 = vadd.f32 %v1077, %v1329
    %1333 = vst.msk [vmem:[#allocation10] sm:$0xff] %vm119, %v1331
    %1334 = vst.msk [vmem:[#allocation10 + $0x8] sm:$0xff] %vm119, %v1332
    // Predicated region
    $region78: #{tpu_custom_call.1} parent=1 // pred_check
      _
    $region79: #{tpu_custom_call.1} parent=1 // pred_check_branch
      %1336 = sbr.rel (0) target = $region81
    $region80: #{tpu_custom_call.1} parent=1 // pred_region
      %1338 = vsyncadd [#allocation4], 0
      %s1339 = sshll.u32 [#allocation10], 4
      %s1340 = int_to_ptr.vmem [resolvable:$true] %s1339
      %s1341 = sshll.u32 %s15, 4
      %s1342 = int_to_ptr.hbm [resolvable:$true] %s1341
      %1347 = dma.vmem_to_hbm [thread:$0]  %s1340, 256, %s1342, [#allocation4], 128, 128, 8
    $region81: #{tpu_custom_call.1} parent=1 // pred_fallthru
      _
    // Predicated region
    $region82: #{tpu_custom_call.1} parent=1 // pred_check
      _
    $region83: #{tpu_custom_call.1} parent=1 // pred_check_branch
      %1349 = sbr.rel (0) target = $region85
    $region84: #{tpu_custom_call.1} parent=1 // pred_region
      %1351 = vsyncadd [#allocation12], 0
      %s1352 = sshll.u32 [#allocation11], 4
      %s1353 = int_to_ptr.vmem [resolvable:$true] %s1352
      %s1354 = sshll.u32 %s16, 4
      %s1355 = int_to_ptr.hbm [resolvable:$true] %s1354
      %1360 = dma.vmem_to_hbm [thread:$0]  %s1353, 256, %s1355, [#allocation12], 128, 128, 8
    $region85: #{tpu_custom_call.1} parent=1 // pred_fallthru
      _
    // Predicated region
    $region86: #{tpu_custom_call.1} parent=1 // pred_check
      _
    $region87: #{tpu_custom_call.1} parent=1 // pred_check_branch
      %1362 = sbr.rel (0) target = $region89
    $region88: #{tpu_custom_call.1} parent=1 // pred_region
      %1364 = dma.done [#allocation4], 256
    $region89: #{tpu_custom_call.1} parent=1 // pred_fallthru
      _
    // Predicated region
    $region90: #{tpu_custom_call.1} parent=1 // pred_check
      _
    $region91: #{tpu_custom_call.1} parent=1 // pred_check_branch
      %1366 = sbr.rel (0) target = $region93
    $region92: #{tpu_custom_call.1} parent=1 // pred_region
      %1368 = dma.done [#allocation12], 256
    $region93: #{tpu_custom_call.1} parent=1 // pred_fallthru
      _
    %1369 = vsyncpa [#allocation3], 1
    %1370 = vsyncpa [#allocation6], 1
    %1371 = vsyncpa [#allocation9], 1
    %1372 = vsyncpa [#allocation4], 1
    %1373 = vsyncpa [#allocation12], 1

</llo_original>
